<compile_context>
chip_gen: v7x
topology: tpu7x:2x2x1
jax: 0.10.0
libtpu: 0.0.40
codegen_flags: <defaults>
</compile_context>

<pallas_src>
import functools

import jax
import jax.numpy as jnp
from jax import lax
from jax.experimental import pallas as pl
from jax.experimental.pallas import tpu as pltpu


def _round_up(x, m):
    return ((x + m - 1) // m) * m


def _tile_bytes(shape, dtype):
    """Bytes of one VMEM tile after (sublane, 128-lane) padding."""
    itemsize = jnp.dtype(dtype).itemsize
    sub = {4: 8, 2: 16, 1: 32}.get(itemsize, 8)
    dims = list(shape)
    if len(dims) >= 1:
        dims[-1] = _round_up(dims[-1], 128)
    if len(dims) >= 2:
        dims[-2] = _round_up(dims[-2], sub)
    n = 1
    for d in dims:
        n *= int(d)
    return n * itemsize


def _vmem_limit(bytes_needed):
    # 2x headroom, at least 32 MiB (v5e scoped default is 16 MiB), capped at 128 MiB.
    return int(min(max(2 * bytes_needed, 32 * 2 ** 20), 128 * 2 ** 20))


def _pick_images_per_step(n, target):
    """Largest divisor of n that is <= target while keeping >= 2 grid steps."""
    for nb in range(min(target, n), 0, -1):
        if n % nb == 0 and (n // nb >= 2 or n == 1):
            return nb
    return 1


# ----------------------------------------------------------------------------
# Pallas kernel: fused eigen-basis conv (pre-composed weight, folded-K im2col)
# ----------------------------------------------------------------------------
def _conv_eigen_kernel(x_ref, w_ref, o_ref, col_ref, *, nb, Ca, kh, kw, sh, sw, Ho, Wo):
    # x_ref   : (nb, Ca, Hp, Wp)   zero-padded, bias-augmented input block (f32)
    # w_ref   : (cout, kh*kw*Ca)   pre-composed Q_G . M . Q_A^T weight (bf16)
    # o_ref   : (nb, cout, Ho*Wo)  lane-dense output block
    # col_ref : (kh*kw*Ca, Ho*Wo)  im2col VMEM scratch (bf16), reused per image
    for b in range(nb):                                   # static unroll over images
        # im2col straight from the ref into the scratch (no full-image value copy)
        for i in range(kh):
            for j in range(kw):
                if sh == 1 and sw == 1:
                    win = x_ref[b, :, i:i + Ho, j:j + Wo]            # (Ca, Ho, Wo)
                else:
                    win = x_ref[b, :, pl.ds(i, Ho, stride=sh),
                                pl.ds(j, Wo, stride=sw)]
                t = i * kw + j
                col_ref[t * Ca:(t + 1) * Ca, :] = (
                    win.reshape(Ca, Ho * Wo).astype(col_ref.dtype))
        # single MXU contraction per image: K = kh*kw*Ca, lane-dense N = Ho*Wo
        acc = jnp.dot(w_ref[...], col_ref[...], preferred_element_type=jnp.float32)
        o_ref[b, :, :] = acc.astype(o_ref.dtype)


def eigen_basis_conv_forward(x, Q_G, Q_A, M_new_basis, *, kernel_size, stride, padding,
                             use_bias, images_per_step=8, mxu_dtype=jnp.bfloat16):
    """x: (N, C, H, W) NCHW -> (N, cout_G, Ho, Wo) NCHW."""
    N, Cx, H, W = x.shape
    kh, kw = kernel_size
    sh, sw = stride
    ph, pw = padding
    cout_nb, patch_size = M_new_basis.shape
    cin_nb = patch_size // (kh * kw)
    cout_G = Q_G.shape[0]
    Ca = Cx + 1 if use_bias else Cx                        # rows of Q_A
    K = kh * kw * Ca

    # ---- one-time weight composition (tiny; HIGHEST precision is free here) ----
    #   W_eff[g, (i,j,c)] = sum_{o,a} Q_G[g,o] * M[o,a,i,j] * Q_A[c,a]
    M4 = M_new_basis.reshape(cout_nb, cin_nb, kh, kw)
    W_eff = jnp.einsum('go,oaij,ca->gijc', Q_G, M4, Q_A,
                       precision=lax.Precision.HIGHEST)
    W_eff = W_eff.reshape(cout_G, K).astype(mxu_dtype)

    # ---- bias channel + spatial zero-pad (equivalent: 1x1 rotation of 0 is 0) ----
    if use_bias:
        x = jnp.concatenate(
            [x, jnp.full((N, 1, H, W), 1.0 / patch_size, x.dtype)], axis=1)
    xpad = jnp.pad(x, ((0, 0), (0, 0), (ph, ph), (pw, pw)))
    Hp, Wp = H + 2 * ph, W + 2 * pw
    Ho = (Hp - kh) // sh + 1
    Wo = (Wp - kw) // sw + 1

    nb = _pick_images_per_step(N, images_per_step)
    grid = (N // nb,)

    need = (2 * _tile_bytes((nb, Ca, Hp, Wp), xpad.dtype)      # double-buffered input
            + 2 * _tile_bytes((cout_G, K), mxu_dtype)
            + 2 * _tile_bytes((nb, cout_G, Ho * Wo), x.dtype)
            + _tile_bytes((K, Ho * Wo), mxu_dtype))            # im2col scratch

    kernel = functools.partial(_conv_eigen_kernel, nb=nb, Ca=Ca, kh=kh, kw=kw,
                               sh=sh, sw=sw, Ho=Ho, Wo=Wo)
    out = pl.pallas_call(
        kernel,
        out_shape=jax.ShapeDtypeStruct((N, cout_G, Ho * Wo), x.dtype),
        grid=grid,
        in_specs=[
            pl.BlockSpec((nb, Ca, Hp, Wp), lambda n: (n, 0, 0, 0)),  # nb padded images
            pl.BlockSpec((cout_G, K), lambda n: (0, 0)),             # composed weight
        ],
        out_specs=pl.BlockSpec((nb, cout_G, Ho * Wo), lambda n: (n, 0, 0)),
        scratch_shapes=[pltpu.VMEM((K, Ho * Wo), mxu_dtype)],
        compiler_params=pltpu.CompilerParams(
            dimension_semantics=("parallel",),
            vmem_limit_bytes=_vmem_limit(need)),
    )(xpad, W_eff)
    return out.reshape(N, cout_G, Ho, Wo)                  # free reshape to NCHW


# ----------------------------------------------------------------------------
# Pallas kernel: single fused matmul + bias for the Linear path
# ----------------------------------------------------------------------------
def _matmul_bias_kernel(x_ref, w_ref, b_ref, o_ref):
    x = x_ref[...].astype(w_ref.dtype)                     # cast activations for the MXU
    acc = jnp.dot(x, w_ref[...], preferred_element_type=jnp.float32)
    o_ref[...] = (acc + b_ref[...]).astype(o_ref.dtype)    # epilogue stays f32


def eigen_basis_linear_forward(x, Q_G, Q_A, M_new_basis, *, use_bias, tb=512,
                               mxu_dtype=jnp.bfloat16):
    """x: (B, Din) -> (B, cout_G) via ONE matmul with the pre-composed weight."""
    B, Din = x.shape
    cout_G = Q_G.shape[0]

    # ---- compose  W_full = Q_A @ M.T @ Q_G.T   (last row == bias when use_bias) ----
    W_full = jnp.einsum('ia,oa,go->ig', Q_A, M_new_basis, Q_G,
                        precision=lax.Precision.HIGHEST)
    if use_bias:
        Wx = W_full[:Din, :]
        bias = W_full[Din, :].reshape(1, cout_G)           # appended input is exactly 1
    else:
        Wx = W_full
        bias = jnp.zeros((1, cout_G), W_full.dtype)

    # ---- lane-dense output: pad cout up to a multiple of 128 with zero columns ----
    Np = _round_up(cout_G, 128)
    Wx = jnp.pad(Wx, ((0, 0), (0, Np - cout_G))).astype(mxu_dtype)
    bias = jnp.pad(bias, ((0, 0), (0, Np - cout_G))).astype(jnp.float32)

    tb_eff = B if B <= tb else tb                          # tb is a multiple of 8
    grid = (pl.cdiv(B, tb_eff),)
    # NOTE: if B % tb_eff != 0 the last block reads OOB rows; safe because each output
    # row depends only on its own input row and OOB output rows are discarded.

    need = (2 * _tile_bytes((tb_eff, Din), x.dtype)
            + 2 * _tile_bytes((Din, Np), mxu_dtype)
            + 2 * _tile_bytes((1, Np), jnp.float32)
            + 2 * _tile_bytes((tb_eff, Np), x.dtype))

    out = pl.pallas_call(
        _matmul_bias_kernel,
        out_shape=jax.ShapeDtypeStruct((B, Np), x.dtype),
        grid=grid,
        in_specs=[
            pl.BlockSpec((tb_eff, Din), lambda i: (i, 0)),
            pl.BlockSpec((Din, Np), lambda i: (0, 0)),
            pl.BlockSpec((1, Np), lambda i: (0, 0)),
        ],
        out_specs=pl.BlockSpec((tb_eff, Np), lambda i: (i, 0)),
        compiler_params=pltpu.CompilerParams(
            dimension_semantics=("parallel",),
            vmem_limit_bytes=_vmem_limit(need)),
    )(x, Wx, bias)
    return out[:, :cout_G]


# ----------------------------------------------------------------------------
# Pure-JAX staged references (ground truth, HIGHEST precision)
# ----------------------------------------------------------------------------
def ref_conv_forward(x, Q_G, Q_A, M_new_basis, *, kernel_size, stride, padding, use_bias):
    N, _, H, W = x.shape
    patch_size = M_new_basis.shape[1]
    if use_bias:
        ones = jnp.full((N, 1, H, W), 1.0 / patch_size, x.dtype)
        x = jnp.concatenate([x, ones], axis=1)
    dn = ("NCHW", "OIHW", "NCHW")
    y = lax.conv_general_dilated(x, Q_A.T[:, :, None, None], (1, 1), "VALID",
                                 dimension_numbers=dn, precision=lax.Precision.HIGHEST)
    kh, kw = kernel_size
    Mw = M_new_basis.reshape(M_new_basis.shape[0], -1, kh, kw)
    y = lax.conv_general_dilated(y, Mw, stride,
                                 [(padding[0], padding[0]), (padding[1], padding[1])],
                                 dimension_numbers=dn, precision=lax.Precision.HIGHEST)
    y = lax.conv_general_dilated(y, Q_G[:, :, None, None], (1, 1), "VALID",
                                 dimension_numbers=dn, precision=lax.Precision.HIGHEST)
    return y


def ref_linear_forward(x, Q_G, Q_A, M_new_basis, *, use_bias):
    if use_bias:
        x = jnp.concatenate([x, jnp.ones((x.shape[0], 1), x.dtype)], axis=1)
    y = jnp.dot(x, Q_A, precision=lax.Precision.HIGHEST)
    y = jnp.dot(y, M_new_basis.T, precision=lax.Precision.HIGHEST)
    y = jnp.dot(y, Q_G.T, precision=lax.Precision.HIGHEST)
    return y


# ----------------------------------------------------------------------------
if __name__ == "__main__":
    key = jax.random.PRNGKey(0)
    k1, k2, k3, k4, k5, k6, k7, k8 = jax.random.split(key, 8)

    # ----- Conv2d case: nn.Conv2d(in=4, out=6, kernel=3x3, stride=1, padding=1), use_bias=True -----
    N, Cx, H, W = 2, 4, 16, 16
    kh, kw = 3, 3
    cin_nb = Cx + 1
    cout_nb = 6
    cout_G = 6
    patch_size = cin_nb * kh * kw

    x = jax.random.normal(k1, (N, Cx, H, W), jnp.float32)
    Q_A = jax.random.normal(k2, (Cx + 1, cin_nb), jnp.float32) * 0.2    # (Cx+1, r_A)
    Q_G = jax.random.normal(k3, (cout_G, cout_nb), jnp.float32) * 0.2
    M_new_basis = jax.random.normal(k4, (cout_nb, patch_size), jnp.float32) * 0.2

    conv_fwd = jax.jit(functools.partial(
        eigen_basis_conv_forward, kernel_size=(kh, kw), stride=(1, 1),
        padding=(1, 1), use_bias=True))
    out_conv = jax.block_until_ready(conv_fwd(x, Q_G, Q_A, M_new_basis))
    ref_conv = ref_conv_forward(x, Q_G, Q_A, M_new_basis, kernel_size=(kh, kw),
                                stride=(1, 1), padding=(1, 1), use_bias=True)
    assert out_conv.shape == (N, cout_G, H, W)
    # kernel: composed weight, bf16 MXU inputs, f32 accumulation vs HIGHEST staged ref
    assert jnp.allclose(out_conv, ref_conv, rtol=2e-2, atol=2e-2)

    # ----- Linear case: nn.Linear(in=32, out=10), use_bias=True -----
    B, Din = 8, 32
    r_A, cout_lin, coutG_lin = Din + 1, 10, 10
    xl = jax.random.normal(k5, (B, Din), jnp.float32)
    Q_A_l = jax.random.normal(k6, (Din + 1, r_A), jnp.float32) * 0.1
    Q_G_l = jax.random.normal(k7, (coutG_lin, cout_lin), jnp.float32) * 0.1
    M_l = jax.random.normal(k8, (cout_lin, r_A), jnp.float32) * 0.1

    lin_fwd = jax.jit(functools.partial(eigen_basis_linear_forward, use_bias=True))
    out_lin = jax.block_until_ready(lin_fwd(xl, Q_G_l, Q_A_l, M_l))
    ref_lin = ref_linear_forward(xl, Q_G_l, Q_A_l, M_l, use_bias=True)
    assert out_lin.shape == (B, coutG_lin)
    assert jnp.allclose(out_lin, ref_lin, rtol=2e-2, atol=2e-2)

    print("KERNEL_OK")
</pallas_src>

<mosaic_0001>
module attributes {stable_mosaic.version = 11 : i64} {
  func.func @_conv_eigen_kernel(%arg0: i32, %arg1: memref<1x5x18x18xf32, #tpu.memory_space<vmem>>, %arg2: memref<6x45xbf16, #tpu.memory_space<vmem>>, %arg3: memref<1x6x256xf32, #tpu.memory_space<vmem>>, %arg4: memref<45x256xbf16, #tpu.memory_space<vmem>>) attributes {dimension_semantics = [#tpu.dimension_semantics<parallel>], iteration_bounds = array<i64: 2>, scalar_prefetch = 0 : i64, scratch_operands = 1 : i64, tpu.core_type = #tpu.core_type<tc>, window_params = [{transform_indices = @transform_0, window_bounds = array<i64: 1, 5, 18, 18>}, {pipeline_mode = #tpu.pipeline_mode<synchronous>, transform_indices = @transform_1, window_bounds = array<i64: 6, 45>}, {transform_indices = @transform_2, window_bounds = array<i64: 1, 6, 256>}]} {
    %c0 = arith.constant 0 : index
    %c0_0 = arith.constant 0 : index
    %c0_1 = arith.constant 0 : index
    %c0_2 = arith.constant 0 : index
    %0 = vector.load %arg1[%c0, %c0_0, %c0_1, %c0_2] : memref<1x5x18x18xf32, #tpu.memory_space<vmem>>, vector<1x5x16x16xf32>
    %1 = vector.shape_cast %0 : vector<1x5x16x16xf32> to vector<5x16x16xf32>
    %2 = vector.shape_cast %1 : vector<5x16x16xf32> to vector<5x256xf32>
    %3 = arith.truncf %2 : vector<5x256xf32> to vector<5x256xbf16>
    %c0_3 = arith.constant 0 : index
    %c0_4 = arith.constant 0 : index
    %4 = vector.load %arg4[%c0_3, %c0_4] : memref<45x256xbf16, #tpu.memory_space<vmem>>, vector<5x256xbf16>
    tpu.vector_store %arg4[%c0_3, %c0_4], %3 {strides = array<i32>} : memref<45x256xbf16, #tpu.memory_space<vmem>>, vector<5x256xbf16>,
    %c0_5 = arith.constant 0 : index
    %c0_6 = arith.constant 0 : index
    %c0_7 = arith.constant 0 : index
    %c1 = arith.constant 1 : index
    %5 = vector.load %arg1[%c0_5, %c0_6, %c0_7, %c1] : memref<1x5x18x18xf32, #tpu.memory_space<vmem>>, vector<1x5x16x16xf32>
    %6 = vector.shape_cast %5 : vector<1x5x16x16xf32> to vector<5x16x16xf32>
    %7 = vector.shape_cast %6 : vector<5x16x16xf32> to vector<5x256xf32>
    %8 = arith.truncf %7 : vector<5x256xf32> to vector<5x256xbf16>
    %c5 = arith.constant 5 : index
    %c0_8 = arith.constant 0 : index
    %9 = vector.load %arg4[%c5, %c0_8] : memref<45x256xbf16, #tpu.memory_space<vmem>>, vector<5x256xbf16>
    tpu.vector_store %arg4[%c5, %c0_8], %8 {strides = array<i32>} : memref<45x256xbf16, #tpu.memory_space<vmem>>, vector<5x256xbf16>,
    %c0_9 = arith.constant 0 : index
    %c0_10 = arith.constant 0 : index
    %c0_11 = arith.constant 0 : index
    %c2 = arith.constant 2 : index
    %10 = vector.load %arg1[%c0_9, %c0_10, %c0_11, %c2] : memref<1x5x18x18xf32, #tpu.memory_space<vmem>>, vector<1x5x16x16xf32>
    %11 = vector.shape_cast %10 : vector<1x5x16x16xf32> to vector<5x16x16xf32>
    %12 = vector.shape_cast %11 : vector<5x16x16xf32> to vector<5x256xf32>
    %13 = arith.truncf %12 : vector<5x256xf32> to vector<5x256xbf16>
    %c10 = arith.constant 10 : index
    %c0_12 = arith.constant 0 : index
    %14 = vector.load %arg4[%c10, %c0_12] : memref<45x256xbf16, #tpu.memory_space<vmem>>, vector<5x256xbf16>
    tpu.vector_store %arg4[%c10, %c0_12], %13 {strides = array<i32>} : memref<45x256xbf16, #tpu.memory_space<vmem>>, vector<5x256xbf16>,
    %c0_13 = arith.constant 0 : index
    %c0_14 = arith.constant 0 : index
    %c1_15 = arith.constant 1 : index
    %c0_16 = arith.constant 0 : index
    %15 = vector.load %arg1[%c0_13, %c0_14, %c1_15, %c0_16] : memref<1x5x18x18xf32, #tpu.memory_space<vmem>>, vector<1x5x16x16xf32>
    %16 = vector.shape_cast %15 : vector<1x5x16x16xf32> to vector<5x16x16xf32>
    %17 = vector.shape_cast %16 : vector<5x16x16xf32> to vector<5x256xf32>
    %18 = arith.truncf %17 : vector<5x256xf32> to vector<5x256xbf16>
    %c15 = arith.constant 15 : index
    %c0_17 = arith.constant 0 : index
    %19 = vector.load %arg4[%c15, %c0_17] : memref<45x256xbf16, #tpu.memory_space<vmem>>, vector<5x256xbf16>
    tpu.vector_store %arg4[%c15, %c0_17], %18 {strides = array<i32>} : memref<45x256xbf16, #tpu.memory_space<vmem>>, vector<5x256xbf16>,
    %c0_18 = arith.constant 0 : index
    %c0_19 = arith.constant 0 : index
    %c1_20 = arith.constant 1 : index
    %c1_21 = arith.constant 1 : index
    %20 = vector.load %arg1[%c0_18, %c0_19, %c1_20, %c1_21] : memref<1x5x18x18xf32, #tpu.memory_space<vmem>>, vector<1x5x16x16xf32>
    %21 = vector.shape_cast %20 : vector<1x5x16x16xf32> to vector<5x16x16xf32>
    %22 = vector.shape_cast %21 : vector<5x16x16xf32> to vector<5x256xf32>
    %23 = arith.truncf %22 : vector<5x256xf32> to vector<5x256xbf16>
    %c20 = arith.constant 20 : index
    %c0_22 = arith.constant 0 : index
    %24 = vector.load %arg4[%c20, %c0_22] : memref<45x256xbf16, #tpu.memory_space<vmem>>, vector<5x256xbf16>
    tpu.vector_store %arg4[%c20, %c0_22], %23 {strides = array<i32>} : memref<45x256xbf16, #tpu.memory_space<vmem>>, vector<5x256xbf16>,
    %c0_23 = arith.constant 0 : index
    %c0_24 = arith.constant 0 : index
    %c1_25 = arith.constant 1 : index
    %c2_26 = arith.constant 2 : index
    %25 = vector.load %arg1[%c0_23, %c0_24, %c1_25, %c2_26] : memref<1x5x18x18xf32, #tpu.memory_space<vmem>>, vector<1x5x16x16xf32>
    %26 = vector.shape_cast %25 : vector<1x5x16x16xf32> to vector<5x16x16xf32>
    %27 = vector.shape_cast %26 : vector<5x16x16xf32> to vector<5x256xf32>
    %28 = arith.truncf %27 : vector<5x256xf32> to vector<5x256xbf16>
    %c25 = arith.constant 25 : index
    %c0_27 = arith.constant 0 : index
    %29 = vector.load %arg4[%c25, %c0_27] : memref<45x256xbf16, #tpu.memory_space<vmem>>, vector<5x256xbf16>
    tpu.vector_store %arg4[%c25, %c0_27], %28 {strides = array<i32>} : memref<45x256xbf16, #tpu.memory_space<vmem>>, vector<5x256xbf16>,
    %c0_28 = arith.constant 0 : index
    %c0_29 = arith.constant 0 : index
    %c2_30 = arith.constant 2 : index
    %c0_31 = arith.constant 0 : index
    %30 = vector.load %arg1[%c0_28, %c0_29, %c2_30, %c0_31] : memref<1x5x18x18xf32, #tpu.memory_space<vmem>>, vector<1x5x16x16xf32>
    %31 = vector.shape_cast %30 : vector<1x5x16x16xf32> to vector<5x16x16xf32>
    %32 = vector.shape_cast %31 : vector<5x16x16xf32> to vector<5x256xf32>
    %33 = arith.truncf %32 : vector<5x256xf32> to vector<5x256xbf16>
    %c30 = arith.constant 30 : index
    %c0_32 = arith.constant 0 : index
    %34 = vector.load %arg4[%c30, %c0_32] : memref<45x256xbf16, #tpu.memory_space<vmem>>, vector<5x256xbf16>
    tpu.vector_store %arg4[%c30, %c0_32], %33 {strides = array<i32>} : memref<45x256xbf16, #tpu.memory_space<vmem>>, vector<5x256xbf16>,
    %c0_33 = arith.constant 0 : index
    %c0_34 = arith.constant 0 : index
    %c2_35 = arith.constant 2 : index
    %c1_36 = arith.constant 1 : index
    %35 = vector.load %arg1[%c0_33, %c0_34, %c2_35, %c1_36] : memref<1x5x18x18xf32, #tpu.memory_space<vmem>>, vector<1x5x16x16xf32>
    %36 = vector.shape_cast %35 : vector<1x5x16x16xf32> to vector<5x16x16xf32>
    %37 = vector.shape_cast %36 : vector<5x16x16xf32> to vector<5x256xf32>
    %38 = arith.truncf %37 : vector<5x256xf32> to vector<5x256xbf16>
    %c35 = arith.constant 35 : index
    %c0_37 = arith.constant 0 : index
    %39 = vector.load %arg4[%c35, %c0_37] : memref<45x256xbf16, #tpu.memory_space<vmem>>, vector<5x256xbf16>
    tpu.vector_store %arg4[%c35, %c0_37], %38 {strides = array<i32>} : memref<45x256xbf16, #tpu.memory_space<vmem>>, vector<5x256xbf16>,
    %c0_38 = arith.constant 0 : index
    %c0_39 = arith.constant 0 : index
    %c2_40 = arith.constant 2 : index
    %c2_41 = arith.constant 2 : index
    %40 = vector.load %arg1[%c0_38, %c0_39, %c2_40, %c2_41] : memref<1x5x18x18xf32, #tpu.memory_space<vmem>>, vector<1x5x16x16xf32>
    %41 = vector.shape_cast %40 : vector<1x5x16x16xf32> to vector<5x16x16xf32>
    %42 = vector.shape_cast %41 : vector<5x16x16xf32> to vector<5x256xf32>
    %43 = arith.truncf %42 : vector<5x256xf32> to vector<5x256xbf16>
    %c40 = arith.constant 40 : index
    %c0_42 = arith.constant 0 : index
    %44 = vector.load %arg4[%c40, %c0_42] : memref<45x256xbf16, #tpu.memory_space<vmem>>, vector<5x256xbf16>
    tpu.vector_store %arg4[%c40, %c0_42], %43 {strides = array<i32>} : memref<45x256xbf16, #tpu.memory_space<vmem>>, vector<5x256xbf16>,
    %c0_43 = arith.constant 0 : index
    %c0_44 = arith.constant 0 : index
    %45 = vector.load %arg2[%c0_43, %c0_44] : memref<6x45xbf16, #tpu.memory_space<vmem>>, vector<6x45xbf16>
    %c0_45 = arith.constant 0 : index
    %c0_46 = arith.constant 0 : index
    %46 = vector.load %arg4[%c0_45, %c0_46] : memref<45x256xbf16, #tpu.memory_space<vmem>>, vector<45x256xbf16>
    %cst = arith.constant dense<0.000000e+00> : vector<6x256xf32>
    %47 = tpu.matmul %45, %46, %cst {dimension_numbers = #tpu.dot_dimension_numbers<[1], [0], [0], [1], [0, 0, 1, 1], [], []>} : vector<6x45xbf16>, vector<45x256xbf16>, vector<6x256xf32> -> vector<6x256xf32>
    %c0_47 = arith.constant 0 : index
    %c0_48 = arith.constant 0 : index
    %c0_49 = arith.constant 0 : index
    %48 = vector.load %arg3[%c0_47, %c0_48, %c0_49] : memref<1x6x256xf32, #tpu.memory_space<vmem>>, vector<1x6x256xf32>
    %49 = vector.shape_cast %48 : vector<1x6x256xf32> to vector<6x256xf32>
    %50 = vector.shape_cast %47 : vector<6x256xf32> to vector<1x6x256xf32>
    tpu.vector_store %arg3[%c0_47, %c0_48, %c0_49], %50 {strides = array<i32>} : memref<1x6x256xf32, #tpu.memory_space<vmem>>, vector<1x6x256xf32>,
    return
  }
  func.func @transform_0(%arg0: i32) -> (i32, i32, i32, i32) {
    %c0_i32 = arith.constant 0 : i32
    %c0_i32_0 = arith.constant 0 : i32
    %c0_i32_1 = arith.constant 0 : i32
    %c0_i32_2 = arith.constant 0 : i32
    return %arg0, %c0_i32, %c0_i32_0, %c0_i32_1 : i32, i32, i32, i32
  }
  func.func @transform_1(%arg0: i32) -> (i32, i32) {
    %c0_i32 = arith.constant 0 : i32
    %c0_i32_0 = arith.constant 0 : i32
    %c0_i32_1 = arith.constant 0 : i32
    return %c0_i32, %c0_i32_0 : i32, i32
  }
  func.func @transform_2(%arg0: i32) -> (i32, i32, i32) {
    %c0_i32 = arith.constant 0 : i32
    %c0_i32_0 = arith.constant 0 : i32
    %c0_i32_1 = arith.constant 0 : i32
    return %arg0, %c0_i32, %c0_i32_0 : i32, i32, i32
  }
}

</mosaic_0001>

<llo_original>
// kernel: eigen_basis_conv_forward.1
$region0: #{eigen_basis_conv_forward.1}
  #allocation0 [shape = 'u32[]', space=smem, size = 0x4, offset = 0x4, fixed_abs, tag = 'smem constant byte address 0x4 - core index']
  #allocation1 [shape = 'u32[144,128]{1,0:T(1,128)}', space=vmem, size = 0x12000, scoped, tag = 'internal scratch']
  #allocation2 [shape = 'bf16[45,256]{1,0:T(8,128)(2,1)}', space=vmem, size = 0x6000, scoped, tag = 'scratch operand']
  %s0 = inlined_call_operand.vmem [shape: f32[2,5,18,18], index: 0, kind: input, shape index: {}]
  %s1 = inlined_call_operand.vmem [shape: bf16[6,45], index: 1, kind: input, shape index: {}]
  %s2 = inlined_call_operand.vmem [shape: f32[2,6,256], index: 2, kind: output, shape index: {}]
  %s3 = sld [smem:[#allocation0]]
  $region41: #{eigen_basis_conv_forward.1} parent=0
    _
  %s5 = ssub.s32 1, %s3
  %s6 = scalar_select 0, %s5, %s3
  loop: start=0, step=1, limit=4
  $region2: #{eigen_basis_conv_forward.1} parent=0 // loop_pre_header
    _
  $region3: #{eigen_basis_conv_forward.1} parent=0 // loop_header
    %s8 = sphi 0, %s12
    %p9 = scmp.ge.s32.totalorder %s8, 4
    %s18 = sphi 0, %s20
    %s21 = sphi 0, %s18
    %s22 = sphi 0, %s21
    %s38 = sphi 0, %s22
    %s42 = sphi 0, %s42
    %s44 = sphi 0, %s42
    %s45 = sphi 0, %s44
    %s59 = sphi 0, %s45
    %s65 = sphi 0, %s67
    %s68 = sphi 0, %s65
    %s69 = sphi 0, %s68
    %s85 = sphi 0, %s69
  $region4: #{eigen_basis_conv_forward.1} parent=0 // loop_header_branch
    %11 = sbr.rel (%p9) target = $region8
  $region5: #{eigen_basis_conv_forward.1} parent=0 // loop_body
    %s13 = ssub.s32 %s8, 1
    %s14 = ssub.s32 %s8, 2
    %s15 = sadd.s32 %s8, 1
    %s16 = ssub.s32 %s8, %s15
    %p17 = scmp.eq.s32.totalorder %s16, 0
    %s19 = sadd.s32 %s18, 1
    %s20 = scalar_select %p17, %s18, %s19
    %p23 = pneg %p17
    %p24 = scmp.eq.s32.totalorder %s8, 1
    %p25 = por %p23, %p24
    %p26 = scmp.ne.s32.totalorder %s18, %s21
    %p27 = scmp.eq.s32.totalorder %s8, 0
    %p28 = por %p26, %p27
    %p29 = scmp.ne.s32.totalorder %s18, %s21
    %p30 = scmp.eq.s32.totalorder %s13, 1
    %p31 = por %p29, %p30
    %p32 = scmp.ne.s32.totalorder %s21, %s22
    %p33 = scmp.eq.s32.totalorder %s13, 0
    %p34 = por %p32, %p33
    %p35 = scmp.ne.s32.totalorder %s21, %s22
    %p36 = scmp.eq.s32.totalorder %s14, 1
    %p37 = por %p35, %p36
    %p39 = scmp.ne.s32.totalorder %s22, %s38
    %p40 = scmp.eq.s32.totalorder %s14, 0
    %p41 = por %p39, %p40
    %s43 = sadd.s32 %s42, 1
    %p46 = scmp.eq.s32.totalorder %s8, 1
    %p47 = scmp.ne.s32.totalorder %s42, %s44
    %p48 = scmp.eq.s32.totalorder %s8, 0
    %p49 = por %p47, %p48
    %p50 = scmp.ne.s32.totalorder %s42, %s44
    %p51 = scmp.eq.s32.totalorder %s13, 1
    %p52 = por %p50, %p51
    %p53 = scmp.ne.s32.totalorder %s44, %s45
    %p54 = scmp.eq.s32.totalorder %s13, 0
    %p55 = por %p53, %p54
    %p56 = scmp.ne.s32.totalorder %s44, %s45
    %p57 = scmp.eq.s32.totalorder %s14, 1
    %p58 = por %p56, %p57
    %p60 = scmp.ne.s32.totalorder %s45, %s59
    %p61 = scmp.eq.s32.totalorder %s14, 0
    %p62 = por %p60, %p61
    %s63 = ssub.s32 %s8, %s15
    %p64 = scmp.eq.s32.totalorder %s63, 0
    %s66 = sadd.s32 %s65, 1
    %s67 = scalar_select %p64, %s65, %s66
    %p70 = pneg %p64
    %p71 = scmp.eq.s32.totalorder %s8, 1
    %p72 = por %p70, %p71
    %p73 = scmp.ne.s32.totalorder %s65, %s68
    %p74 = scmp.eq.s32.totalorder %s8, 0
    %p75 = por %p73, %p74
    %p76 = scmp.ne.s32.totalorder %s65, %s68
    %p77 = scmp.eq.s32.totalorder %s13, 1
    %p78 = por %p76, %p77
    %p79 = scmp.ne.s32.totalorder %s68, %s69
    %p80 = scmp.eq.s32.totalorder %s13, 0
    %p81 = por %p79, %p80
    %p82 = scmp.ne.s32.totalorder %s68, %s69
    %p83 = scmp.eq.s32.totalorder %s14, 1
    %p84 = por %p82, %p83
    %p86 = scmp.ne.s32.totalorder %s69, %s85
    %p87 = scmp.eq.s32.totalorder %s14, 0
    %p88 = por %p86, %p87
    %p89 = scmp.le.s32.totalorder 1, %s8
    %p90 = scmp.lt.s32.totalorder %s8, 3
    %p91 = pnand %p89, %p90
    %p92 = pneg %p91
    // Predicated region
    $region9: #{eigen_basis_conv_forward.1} parent=5 // pred_check
      _
    $region10: #{eigen_basis_conv_forward.1} parent=5 // pred_check_branch
      %94 = sbr.rel (%p91) target = $region12
    $region11: #{eigen_basis_conv_forward.1} parent=5 // pred_region
      %s95 = ssub.s32 %s8, 1
      // Predicated region
      $region13: #{eigen_basis_conv_forward.1} parent=11 // pred_check
        %p96 = pneg %p55
      $region14: #{eigen_basis_conv_forward.1} parent=11 // pred_check_branch
        %98 = sbr.rel (%p96) target = $region16
      $region15: #{eigen_basis_conv_forward.1} parent=11 // pred_region
        _
      $region16: #{eigen_basis_conv_forward.1} parent=11 // pred_fallthru
        _
    $region12: #{eigen_basis_conv_forward.1} parent=5 // pred_fallthru
      _
    %p99 = scmp.lt.s32.totalorder %s8, 2
    // Predicated region
    $region17: #{eigen_basis_conv_forward.1} parent=5 // pred_check
      %p100 = pneg %p99
    $region18: #{eigen_basis_conv_forward.1} parent=5 // pred_check_branch
      %102 = sbr.rel (%p100) target = $region20
    $region19: #{eigen_basis_conv_forward.1} parent=5 // pred_region
      // Predicated region
      $region21: #{eigen_basis_conv_forward.1} parent=19 // pred_check
        %p103 = pneg %p28
      $region22: #{eigen_basis_conv_forward.1} parent=19 // pred_check_branch
        %105 = sbr.rel (%p103) target = $region24
      $region23: #{eigen_basis_conv_forward.1} parent=19 // pred_region
        %p106 = scmp.lt.s32.totalorder %s8, 1
        %s107 = scalar_select %p106, %s8, 1
        %s108 = smul.addr %s107, 15
        %s109 = smul.addr %s108, 8
        %s110 = scalar_lea.vmem %s0, %s109
      $region24: #{eigen_basis_conv_forward.1} parent=19 // pred_fallthru
        _
    $region20: #{eigen_basis_conv_forward.1} parent=5 // pred_fallthru
      _
    %p111 = scmp.le.s32.totalorder 1, %s8
    %p112 = scmp.lt.s32.totalorder %s8, 3
    %p113 = pnand %p111, %p112
    %p114 = pneg %p113
    // Predicated region
    $region25: #{eigen_basis_conv_forward.1} parent=5 // pred_check
      _
    $region26: #{eigen_basis_conv_forward.1} parent=5 // pred_check_branch
      %116 = sbr.rel (%p113) target = $region28
    $region27: #{eigen_basis_conv_forward.1} parent=5 // pred_region
      %s117 = ssub.s32 %s8, 1
      %p118 = scmp.lt.s32.totalorder %s13, 1
      %s119 = scalar_select %p118, %s13, 1
      %s120 = smul.addr %s119, 15
      %s121 = smul.addr %s120, 8
      %s122 = scalar_lea.vmem %s0, %s121
      %p123 = pneg %p34
      %p124 = pneg %p31
      %p125 = pneg %p55
      %p126 = pneg %p52
      %p127 = pneg %p81
      %p128 = pneg %p78
      %p129 = scmp.lt.s32.totalorder %s13, 1
      %s130 = scalar_select %p129, %s13, 1
      %s131 = smul.addr %s130, 2
      %s132 = smul.addr %s131, 8
      %s133 = scalar_lea.vmem %s2, %s132
      %p134 = scmp.lt.s32.totalorder %s13, 1
      %s135 = scalar_select %p134, %s13, 1
      %s136 = smul.addr %s135, 15
      %s137 = smul.addr %s136, 8
      %s138 = scalar_lea.vmem %s0, %s137
      %p139 = scmp.lt.s32.totalorder %s13, 1
      %s140 = scalar_select %p139, %s13, 1
      %s141 = smul.addr %s140, 2
      %s142 = smul.addr %s141, 8
      %s143 = scalar_lea.vmem %s2, %s142
      %v145 = vld [vmem:[%s138] sm:$0xff]
      %v146 = vld [vmem:[%s138 + $0x8] sm:$0xff]
      %v147 = vld [vmem:[%s138 + $0x18] sm:$0xff]
      %v148 = vld [vmem:[%s138 + $0x20] sm:$0xff]
      %v149 = vld [vmem:[%s138 + $0x30] sm:$0xff]
      %v150 = vld [vmem:[%s138 + $0x38] sm:$0xff]
      %v151 = vld [vmem:[%s138 + $0x48] sm:$0xff]
      %v152 = vld [vmem:[%s138 + $0x50] sm:$0xff]
      %v153 = vld [vmem:[%s138 + $0x60] sm:$0xff]
      %v154 = vld [vmem:[%s138 + $0x68] sm:$0xff]
      %v155 = vcombine.low %v145, %v149
      %v156 = vcombine.high %v145, %v149
      %v158 = vunpack.c.l.s4 1983009808
      %v159 = vunpack.c.0.s8 %v158
      %v160 = vlaneseq
      %v161 = vshrl.u32 %v160, 7
      %v162 = vsub.s32 %v159, %v161
      %v163 = vrot.slane %v155, %v162
      %v165 = vunpack.c.l.s4 1983009808
      %v166 = vunpack.c.0.s8 %v165
      %v167 = vlaneseq
      %v168 = vshrl.u32 %v167, 7
      %v169 = vsub.s32 %v166, %v168
      %v170 = vrot.slane %v156, %v169
      %v171 = vcombine.low %v147, %v151
      %v172 = vcombine.high %v147, %v151
      %v174 = vunpack.c.l.s4 1983009808
      %v175 = vunpack.c.0.s8 %v174
      %v176 = vlaneseq
      %v177 = vshrl.u32 %v176, 7
      %v178 = vsub.s32 %v175, %v177
      %v179 = vrot.slane %v171, %v178
      %v181 = vunpack.c.l.s4 1983009808
      %v182 = vunpack.c.0.s8 %v181
      %v183 = vlaneseq
      %v184 = vshrl.u32 %v183, 7
      %v185 = vsub.s32 %v182, %v184
      %v186 = vrot.slane %v172, %v185
      %v187 = vcombine.high %v153, 0.0
      %v189 = vunpack.c.l.s4 1983009808
      %v190 = vunpack.c.0.s8 %v189
      %v191 = vlaneseq
      %v192 = vshrl.u32 %v191, 7
      %v193 = vsub.s32 %v190, %v192
      %v194 = vrot.slane %v153, %v193
      %v196 = vunpack.c.l.s4 1983009808
      %v197 = vunpack.c.0.s8 %v196
      %v198 = vlaneseq
      %v199 = vshrl.u32 %v198, 7
      %v200 = vsub.s32 %v197, %v199
      %v201 = vrot.slane %v187, %v200
      %v202 = vcombine.low %v163, %v179
      %v203 = vcombine.high %v163, %v179
      %v205 = vunpack.c.l.s4 1934713408
      %v206 = vunpack.c.0.s8 %v205
      %v207 = vlaneseq
      %v208 = vshrl.u32 %v207, 7
      %v209 = vsub.s32 %v206, %v208
      %v210 = vrot.slane %v202, %v209
      %v212 = vunpack.c.l.s4 1934713408
      %v213 = vunpack.c.0.s8 %v212
      %v214 = vlaneseq
      %v215 = vshrl.u32 %v214, 7
      %v216 = vsub.s32 %v213, %v215
      %v217 = vrot.slane %v203, %v216
      %v218 = vcombine.low %v170, %v186
      %v219 = vcombine.high %v170, %v186
      %v221 = vunpack.c.l.s4 1934713408
      %v222 = vunpack.c.0.s8 %v221
      %v223 = vlaneseq
      %v224 = vshrl.u32 %v223, 7
      %v225 = vsub.s32 %v222, %v224
      %v226 = vrot.slane %v218, %v225
      %v228 = vunpack.c.l.s4 1934713408
      %v229 = vunpack.c.0.s8 %v228
      %v230 = vlaneseq
      %v231 = vshrl.u32 %v230, 7
      %v232 = vsub.s32 %v229, %v231
      %v233 = vrot.slane %v219, %v232
      %v234 = vcombine.high %v194, 0.0
      %v236 = vunpack.c.l.s4 1934713408
      %v237 = vunpack.c.0.s8 %v236
      %v238 = vlaneseq
      %v239 = vshrl.u32 %v238, 7
      %v240 = vsub.s32 %v237, %v239
      %v241 = vrot.slane %v194, %v240
      %v243 = vunpack.c.l.s4 1934713408
      %v244 = vunpack.c.0.s8 %v243
      %v245 = vlaneseq
      %v246 = vshrl.u32 %v245, 7
      %v247 = vsub.s32 %v244, %v246
      %v248 = vrot.slane %v234, %v247
      %v249 = vcombine.high %v201, 0.0
      %v251 = vunpack.c.l.s4 1934713408
      %v252 = vunpack.c.0.s8 %v251
      %v253 = vlaneseq
      %v254 = vshrl.u32 %v253, 7
      %v255 = vsub.s32 %v252, %v254
      %v256 = vrot.slane %v201, %v255
      %v258 = vunpack.c.l.s4 1934713408
      %v259 = vunpack.c.0.s8 %v258
      %v260 = vlaneseq
      %v261 = vshrl.u32 %v260, 7
      %v262 = vsub.s32 %v259, %v261
      %v263 = vrot.slane %v249, %v262
      %v264 = vcombine.low %v210, %v241
      %v265 = vcombine.high %v210, %v241
      %v266 = vcombine.low %v217, %v248
      %v267 = vcombine.high %v217, %v248
      %v268 = vcombine.low %v226, %v256
      %v269 = vcombine.high %v226, %v256
      %v270 = vcombine.low %v233, %v263
      %v271 = vcombine.high %v233, %v263
      %v272 = vcombine.low %v146, %v150
      %v273 = vcombine.high %v146, %v150
      %v275 = vunpack.c.l.s4 1983009808
      %v276 = vunpack.c.0.s8 %v275
      %v277 = vlaneseq
      %v278 = vshrl.u32 %v277, 7
      %v279 = vsub.s32 %v276, %v278
      %v280 = vrot.slane %v272, %v279
      %v282 = vunpack.c.l.s4 1983009808
      %v283 = vunpack.c.0.s8 %v282
      %v284 = vlaneseq
      %v285 = vshrl.u32 %v284, 7
      %v286 = vsub.s32 %v283, %v285
      %v287 = vrot.slane %v273, %v286
      %v288 = vcombine.low %v148, %v152
      %v289 = vcombine.high %v148, %v152
      %v291 = vunpack.c.l.s4 1983009808
      %v292 = vunpack.c.0.s8 %v291
      %v293 = vlaneseq
      %v294 = vshrl.u32 %v293, 7
      %v295 = vsub.s32 %v292, %v294
      %v296 = vrot.slane %v288, %v295
      %v298 = vunpack.c.l.s4 1983009808
      %v299 = vunpack.c.0.s8 %v298
      %v300 = vlaneseq
      %v301 = vshrl.u32 %v300, 7
      %v302 = vsub.s32 %v299, %v301
      %v303 = vrot.slane %v289, %v302
      %v304 = vcombine.high %v154, 0.0
      %v306 = vunpack.c.l.s4 1983009808
      %v307 = vunpack.c.0.s8 %v306
      %v308 = vlaneseq
      %v309 = vshrl.u32 %v308, 7
      %v310 = vsub.s32 %v307, %v309
      %v311 = vrot.slane %v154, %v310
      %v313 = vunpack.c.l.s4 1983009808
      %v314 = vunpack.c.0.s8 %v313
      %v315 = vlaneseq
      %v316 = vshrl.u32 %v315, 7
      %v317 = vsub.s32 %v314, %v316
      %v318 = vrot.slane %v304, %v317
      %v319 = vcombine.low %v280, %v296
      %v320 = vcombine.high %v280, %v296
      %v322 = vunpack.c.l.s4 1934713408
      %v323 = vunpack.c.0.s8 %v322
      %v324 = vlaneseq
      %v325 = vshrl.u32 %v324, 7
      %v326 = vsub.s32 %v323, %v325
      %v327 = vrot.slane %v319, %v326
      %v329 = vunpack.c.l.s4 1934713408
      %v330 = vunpack.c.0.s8 %v329
      %v331 = vlaneseq
      %v332 = vshrl.u32 %v331, 7
      %v333 = vsub.s32 %v330, %v332
      %v334 = vrot.slane %v320, %v333
      %v335 = vcombine.low %v287, %v303
      %v336 = vcombine.high %v287, %v303
      %v338 = vunpack.c.l.s4 1934713408
      %v339 = vunpack.c.0.s8 %v338
      %v340 = vlaneseq
      %v341 = vshrl.u32 %v340, 7
      %v342 = vsub.s32 %v339, %v341
      %v343 = vrot.slane %v335, %v342
      %v345 = vunpack.c.l.s4 1934713408
      %v346 = vunpack.c.0.s8 %v345
      %v347 = vlaneseq
      %v348 = vshrl.u32 %v347, 7
      %v349 = vsub.s32 %v346, %v348
      %v350 = vrot.slane %v336, %v349
      %v351 = vcombine.high %v311, 0.0
      %v353 = vunpack.c.l.s4 1934713408
      %v354 = vunpack.c.0.s8 %v353
      %v355 = vlaneseq
      %v356 = vshrl.u32 %v355, 7
      %v357 = vsub.s32 %v354, %v356
      %v358 = vrot.slane %v311, %v357
      %v360 = vunpack.c.l.s4 1934713408
      %v361 = vunpack.c.0.s8 %v360
      %v362 = vlaneseq
      %v363 = vshrl.u32 %v362, 7
      %v364 = vsub.s32 %v361, %v363
      %v365 = vrot.slane %v351, %v364
      %v366 = vcombine.high %v318, 0.0
      %v368 = vunpack.c.l.s4 1934713408
      %v369 = vunpack.c.0.s8 %v368
      %v370 = vlaneseq
      %v371 = vshrl.u32 %v370, 7
      %v372 = vsub.s32 %v369, %v371
      %v373 = vrot.slane %v318, %v372
      %v375 = vunpack.c.l.s4 1934713408
      %v376 = vunpack.c.0.s8 %v375
      %v377 = vlaneseq
      %v378 = vshrl.u32 %v377, 7
      %v379 = vsub.s32 %v376, %v378
      %v380 = vrot.slane %v366, %v379
      %v381 = vcombine.low %v327, %v358
      %v382 = vcombine.high %v327, %v358
      %v383 = vcombine.low %v334, %v365
      %v384 = vcombine.high %v334, %v365
      %v385 = vcombine.low %v343, %v373
      %v386 = vcombine.high %v343, %v373
      %v387 = vcombine.low %v350, %v380
      %v388 = vcombine.high %v350, %v380
      %390 = vrot.lane.b32.xlu0 %v265, 16
      %v391 = vpop.permute.xlu0 %390
      %394 = vrot.lane.b32.xlu0 %v266, 32
      %v395 = vpop.permute.xlu0 %394
      %398 = vrot.lane.b32.xlu0 %v267, 48
      %v399 = vpop.permute.xlu0 %398
      %402 = vrot.lane.b32.xlu0 %v268, 64
      %v403 = vpop.permute.xlu0 %402
      %406 = vrot.lane.b32.xlu0 %v269, 80
      %v407 = vpop.permute.xlu0 %406
      %410 = vrot.lane.b32.xlu0 %v270, 96
      %v411 = vpop.permute.xlu0 %410
      %414 = vrot.lane.b32.xlu0 %v271, 112
      %v415 = vpop.permute.xlu0 %414
      %418 = vrot.lane.b32.xlu0 %v382, 16
      %v419 = vpop.permute.xlu0 %418
      %422 = vrot.lane.b32.xlu0 %v383, 32
      %v423 = vpop.permute.xlu0 %422
      %426 = vrot.lane.b32.xlu0 %v384, 48
      %v427 = vpop.permute.xlu0 %426
      %430 = vrot.lane.b32.xlu0 %v385, 64
      %v431 = vpop.permute.xlu0 %430
      %434 = vrot.lane.b32.xlu0 %v386, 80
      %v435 = vpop.permute.xlu0 %434
      %438 = vrot.lane.b32.xlu0 %v387, 96
      %v439 = vpop.permute.xlu0 %438
      %442 = vrot.lane.b32.xlu0 %v388, 112
      %v443 = vpop.permute.xlu0 %442
      %vm445 = vcmask 130048
      %v446 = vsel %vm445, %v264, %v391
      %vm447 = vcmask 261120
      %v448 = vsel %vm447, %v446, %v395
      %vm449 = vcmask 392192
      %v450 = vsel %vm449, %v448, %v399
      %vm451 = vcmask 523264
      %v452 = vsel %vm451, %v450, %v403
      %vm453 = vcmask 654336
      %v454 = vsel %vm453, %v452, %v407
      %vm455 = vcmask 785408
      %v456 = vsel %vm455, %v454, %v411
      %vm457 = vcmask 916480
      %v458 = vsel %vm457, %v456, %v415
      %v459 = vsel %vm445, %v381, %v419
      %v460 = vsel %vm447, %v459, %v423
      %v461 = vsel %vm449, %v460, %v427
      %v462 = vsel %vm451, %v461, %v431
      %v463 = vsel %vm453, %v462, %v435
      %v464 = vsel %vm455, %v463, %v439
      %v465 = vsel %vm457, %v464, %v443
      %v466 = vpack.c.bf16 %v458, %v458
      %v467 = vpack.c.bf16 %v465, %v465
      %v470 = vunpack.c.l.b16 %v466
      %v471 = vunpack.c.l.b16 %v467
      %v472 = vpack.c.b16 %v471, %v470
      %vm474 = vcmask 1042432
      %vm475 = vsmask.f32 2304
      %vm476 = vmand %vm474, %vm475
      %vm477 = vcmask 1046532
      %vm478 = vsmask.f32 6400
      %vm479 = vmand %vm477, %vm478
      %vm480 = vmor %vm479, %vm476
      %v481 = vld [vmem:[#allocation2] sm:$0x77]
      %v482 = vsel %vm480, %v472, %v481
      %483 = vst [vmem:[#allocation2] sm:$0x77] %v482
      %v484 = vld [vmem:[%s138] sm:$0xff]
      %v485 = vld [vmem:[%s138 + $0x8] sm:$0xff]
      %v486 = vld [vmem:[%s138 + $0x18] sm:$0xff]
      %v487 = vld [vmem:[%s138 + $0x20] sm:$0xff]
      %v488 = vld [vmem:[%s138 + $0x30] sm:$0xff]
      %v489 = vld [vmem:[%s138 + $0x38] sm:$0xff]
      %v490 = vld [vmem:[%s138 + $0x48] sm:$0xff]
      %v491 = vld [vmem:[%s138 + $0x50] sm:$0xff]
      %v492 = vld [vmem:[%s138 + $0x60] sm:$0xff]
      %v493 = vld [vmem:[%s138 + $0x68] sm:$0xff]
      %504 = vrot.lane.b32.xlu0 %v484, 127
      %v505 = vpop.permute.xlu0 %504
      %506 = vrot.lane.b32.xlu0 %v485, 127
      %v507 = vpop.permute.xlu0 %506
      %508 = vrot.lane.b32.xlu0 %v486, 127
      %v509 = vpop.permute.xlu0 %508
      %510 = vrot.lane.b32.xlu0 %v487, 127
      %v511 = vpop.permute.xlu0 %510
      %512 = vrot.lane.b32.xlu0 %v488, 127
      %v513 = vpop.permute.xlu0 %512
      %514 = vrot.lane.b32.xlu0 %v489, 127
      %v515 = vpop.permute.xlu0 %514
      %516 = vrot.lane.b32.xlu0 %v490, 127
      %v517 = vpop.permute.xlu0 %516
      %518 = vrot.lane.b32.xlu0 %v491, 127
      %v519 = vpop.permute.xlu0 %518
      %520 = vrot.lane.b32.xlu0 %v492, 127
      %v521 = vpop.permute.xlu0 %520
      %522 = vrot.lane.b32.xlu0 %v493, 127
      %v523 = vpop.permute.xlu0 %522
      %v534 = vcombine.low %v505, %v513
      %v535 = vcombine.high %v505, %v513
      %v537 = vunpack.c.l.s4 1983009808
      %v538 = vunpack.c.0.s8 %v537
      %v539 = vlaneseq
      %v540 = vshrl.u32 %v539, 7
      %v541 = vsub.s32 %v538, %v540
      %v542 = vrot.slane %v534, %v541
      %v544 = vunpack.c.l.s4 1983009808
      %v545 = vunpack.c.0.s8 %v544
      %v546 = vlaneseq
      %v547 = vshrl.u32 %v546, 7
      %v548 = vsub.s32 %v545, %v547
      %v549 = vrot.slane %v535, %v548
      %v550 = vcombine.low %v509, %v517
      %v551 = vcombine.high %v509, %v517
      %v553 = vunpack.c.l.s4 1983009808
      %v554 = vunpack.c.0.s8 %v553
      %v555 = vlaneseq
      %v556 = vshrl.u32 %v555, 7
      %v557 = vsub.s32 %v554, %v556
      %v558 = vrot.slane %v550, %v557
      %v560 = vunpack.c.l.s4 1983009808
      %v561 = vunpack.c.0.s8 %v560
      %v562 = vlaneseq
      %v563 = vshrl.u32 %v562, 7
      %v564 = vsub.s32 %v561, %v563
      %v565 = vrot.slane %v551, %v564
      %v566 = vcombine.high %v521, 0.0
      %v568 = vunpack.c.l.s4 1983009808
      %v569 = vunpack.c.0.s8 %v568
      %v570 = vlaneseq
      %v571 = vshrl.u32 %v570, 7
      %v572 = vsub.s32 %v569, %v571
      %v573 = vrot.slane %v521, %v572
      %v575 = vunpack.c.l.s4 1983009808
      %v576 = vunpack.c.0.s8 %v575
      %v577 = vlaneseq
      %v578 = vshrl.u32 %v577, 7
      %v579 = vsub.s32 %v576, %v578
      %v580 = vrot.slane %v566, %v579
      %v581 = vcombine.low %v542, %v558
      %v582 = vcombine.high %v542, %v558
      %v584 = vunpack.c.l.s4 1934713408
      %v585 = vunpack.c.0.s8 %v584
      %v586 = vlaneseq
      %v587 = vshrl.u32 %v586, 7
      %v588 = vsub.s32 %v585, %v587
      %v589 = vrot.slane %v581, %v588
      %v591 = vunpack.c.l.s4 1934713408
      %v592 = vunpack.c.0.s8 %v591
      %v593 = vlaneseq
      %v594 = vshrl.u32 %v593, 7
      %v595 = vsub.s32 %v592, %v594
      %v596 = vrot.slane %v582, %v595
      %v597 = vcombine.low %v549, %v565
      %v598 = vcombine.high %v549, %v565
      %v600 = vunpack.c.l.s4 1934713408
      %v601 = vunpack.c.0.s8 %v600
      %v602 = vlaneseq
      %v603 = vshrl.u32 %v602, 7
      %v604 = vsub.s32 %v601, %v603
      %v605 = vrot.slane %v597, %v604
      %v607 = vunpack.c.l.s4 1934713408
      %v608 = vunpack.c.0.s8 %v607
      %v609 = vlaneseq
      %v610 = vshrl.u32 %v609, 7
      %v611 = vsub.s32 %v608, %v610
      %v612 = vrot.slane %v598, %v611
      %v613 = vcombine.high %v573, 0.0
      %v615 = vunpack.c.l.s4 1934713408
      %v616 = vunpack.c.0.s8 %v615
      %v617 = vlaneseq
      %v618 = vshrl.u32 %v617, 7
      %v619 = vsub.s32 %v616, %v618
      %v620 = vrot.slane %v573, %v619
      %v622 = vunpack.c.l.s4 1934713408
      %v623 = vunpack.c.0.s8 %v622
      %v624 = vlaneseq
      %v625 = vshrl.u32 %v624, 7
      %v626 = vsub.s32 %v623, %v625
      %v627 = vrot.slane %v613, %v626
      %v628 = vcombine.high %v580, 0.0
      %v630 = vunpack.c.l.s4 1934713408
      %v631 = vunpack.c.0.s8 %v630
      %v632 = vlaneseq
      %v633 = vshrl.u32 %v632, 7
      %v634 = vsub.s32 %v631, %v633
      %v635 = vrot.slane %v580, %v634
      %v637 = vunpack.c.l.s4 1934713408
      %v638 = vunpack.c.0.s8 %v637
      %v639 = vlaneseq
      %v640 = vshrl.u32 %v639, 7
      %v641 = vsub.s32 %v638, %v640
      %v642 = vrot.slane %v628, %v641
      %v643 = vcombine.low %v589, %v620
      %v644 = vcombine.high %v589, %v620
      %v645 = vcombine.low %v596, %v627
      %v646 = vcombine.high %v596, %v627
      %v647 = vcombine.low %v605, %v635
      %v648 = vcombine.high %v605, %v635
      %v649 = vcombine.low %v612, %v642
      %v650 = vcombine.high %v612, %v642
      %v651 = vcombine.low %v507, %v515
      %v652 = vcombine.high %v507, %v515
      %v654 = vunpack.c.l.s4 1983009808
      %v655 = vunpack.c.0.s8 %v654
      %v656 = vlaneseq
      %v657 = vshrl.u32 %v656, 7
      %v658 = vsub.s32 %v655, %v657
      %v659 = vrot.slane %v651, %v658
      %v661 = vunpack.c.l.s4 1983009808
      %v662 = vunpack.c.0.s8 %v661
      %v663 = vlaneseq
      %v664 = vshrl.u32 %v663, 7
      %v665 = vsub.s32 %v662, %v664
      %v666 = vrot.slane %v652, %v665
      %v667 = vcombine.low %v511, %v519
      %v668 = vcombine.high %v511, %v519
      %v670 = vunpack.c.l.s4 1983009808
      %v671 = vunpack.c.0.s8 %v670
      %v672 = vlaneseq
      %v673 = vshrl.u32 %v672, 7
      %v674 = vsub.s32 %v671, %v673
      %v675 = vrot.slane %v667, %v674
      %v677 = vunpack.c.l.s4 1983009808
      %v678 = vunpack.c.0.s8 %v677
      %v679 = vlaneseq
      %v680 = vshrl.u32 %v679, 7
      %v681 = vsub.s32 %v678, %v680
      %v682 = vrot.slane %v668, %v681
      %v683 = vcombine.high %v523, 0.0
      %v685 = vunpack.c.l.s4 1983009808
      %v686 = vunpack.c.0.s8 %v685
      %v687 = vlaneseq
      %v688 = vshrl.u32 %v687, 7
      %v689 = vsub.s32 %v686, %v688
      %v690 = vrot.slane %v523, %v689
      %v692 = vunpack.c.l.s4 1983009808
      %v693 = vunpack.c.0.s8 %v692
      %v694 = vlaneseq
      %v695 = vshrl.u32 %v694, 7
      %v696 = vsub.s32 %v693, %v695
      %v697 = vrot.slane %v683, %v696
      %v698 = vcombine.low %v659, %v675
      %v699 = vcombine.high %v659, %v675
      %v701 = vunpack.c.l.s4 1934713408
      %v702 = vunpack.c.0.s8 %v701
      %v703 = vlaneseq
      %v704 = vshrl.u32 %v703, 7
      %v705 = vsub.s32 %v702, %v704
      %v706 = vrot.slane %v698, %v705
      %v708 = vunpack.c.l.s4 1934713408
      %v709 = vunpack.c.0.s8 %v708
      %v710 = vlaneseq
      %v711 = vshrl.u32 %v710, 7
      %v712 = vsub.s32 %v709, %v711
      %v713 = vrot.slane %v699, %v712
      %v714 = vcombine.low %v666, %v682
      %v715 = vcombine.high %v666, %v682
      %v717 = vunpack.c.l.s4 1934713408
      %v718 = vunpack.c.0.s8 %v717
      %v719 = vlaneseq
      %v720 = vshrl.u32 %v719, 7
      %v721 = vsub.s32 %v718, %v720
      %v722 = vrot.slane %v714, %v721
      %v724 = vunpack.c.l.s4 1934713408
      %v725 = vunpack.c.0.s8 %v724
      %v726 = vlaneseq
      %v727 = vshrl.u32 %v726, 7
      %v728 = vsub.s32 %v725, %v727
      %v729 = vrot.slane %v715, %v728
      %v730 = vcombine.high %v690, 0.0
      %v732 = vunpack.c.l.s4 1934713408
      %v733 = vunpack.c.0.s8 %v732
      %v734 = vlaneseq
      %v735 = vshrl.u32 %v734, 7
      %v736 = vsub.s32 %v733, %v735
      %v737 = vrot.slane %v690, %v736
      %v739 = vunpack.c.l.s4 1934713408
      %v740 = vunpack.c.0.s8 %v739
      %v741 = vlaneseq
      %v742 = vshrl.u32 %v741, 7
      %v743 = vsub.s32 %v740, %v742
      %v744 = vrot.slane %v730, %v743
      %v745 = vcombine.high %v697, 0.0
      %v747 = vunpack.c.l.s4 1934713408
      %v748 = vunpack.c.0.s8 %v747
      %v749 = vlaneseq
      %v750 = vshrl.u32 %v749, 7
      %v751 = vsub.s32 %v748, %v750
      %v752 = vrot.slane %v697, %v751
      %v754 = vunpack.c.l.s4 1934713408
      %v755 = vunpack.c.0.s8 %v754
      %v756 = vlaneseq
      %v757 = vshrl.u32 %v756, 7
      %v758 = vsub.s32 %v755, %v757
      %v759 = vrot.slane %v745, %v758
      %v760 = vcombine.low %v706, %v737
      %v761 = vcombine.high %v706, %v737
      %v762 = vcombine.low %v713, %v744
      %v763 = vcombine.high %v713, %v744
      %v764 = vcombine.low %v722, %v752
      %v765 = vcombine.high %v722, %v752
      %v766 = vcombine.low %v729, %v759
      %v767 = vcombine.high %v729, %v759
      %769 = vrot.lane.b32.xlu0 %v644, 16
      %v770 = vpop.permute.xlu0 %769
      %773 = vrot.lane.b32.xlu0 %v645, 32
      %v774 = vpop.permute.xlu0 %773
      %777 = vrot.lane.b32.xlu0 %v646, 48
      %v778 = vpop.permute.xlu0 %777
      %781 = vrot.lane.b32.xlu0 %v647, 64
      %v782 = vpop.permute.xlu0 %781
      %785 = vrot.lane.b32.xlu0 %v648, 80
      %v786 = vpop.permute.xlu0 %785
      %789 = vrot.lane.b32.xlu0 %v649, 96
      %v790 = vpop.permute.xlu0 %789
      %793 = vrot.lane.b32.xlu0 %v650, 112
      %v794 = vpop.permute.xlu0 %793
      %797 = vrot.lane.b32.xlu0 %v761, 16
      %v798 = vpop.permute.xlu0 %797
      %801 = vrot.lane.b32.xlu0 %v762, 32
      %v802 = vpop.permute.xlu0 %801
      %805 = vrot.lane.b32.xlu0 %v763, 48
      %v806 = vpop.permute.xlu0 %805
      %809 = vrot.lane.b32.xlu0 %v764, 64
      %v810 = vpop.permute.xlu0 %809
      %813 = vrot.lane.b32.xlu0 %v765, 80
      %v814 = vpop.permute.xlu0 %813
      %817 = vrot.lane.b32.xlu0 %v766, 96
      %v818 = vpop.permute.xlu0 %817
      %821 = vrot.lane.b32.xlu0 %v767, 112
      %v822 = vpop.permute.xlu0 %821
      %v824 = vsel %vm445, %v643, %v770
      %v825 = vsel %vm447, %v824, %v774
      %v826 = vsel %vm449, %v825, %v778
      %v827 = vsel %vm451, %v826, %v782
      %v828 = vsel %vm453, %v827, %v786
      %v829 = vsel %vm455, %v828, %v790
      %v830 = vsel %vm457, %v829, %v794
      %v831 = vsel %vm445, %v760, %v798
      %v832 = vsel %vm447, %v831, %v802
      %v833 = vsel %vm449, %v832, %v806
      %v834 = vsel %vm451, %v833, %v810
      %v835 = vsel %vm453, %v834, %v814
      %v836 = vsel %vm455, %v835, %v818
      %v837 = vsel %vm457, %v836, %v822
      %v838 = vpack.c.bf16 %v830, %v830
      %v839 = vpack.c.bf16 %v837, %v837
      %v842 = vunpack.c.l.b16 %v838
      %v843 = vunpack.c.l.b16 %v839
      %v844 = vpack.c.b16 %v843, %v842
      %v846 = vshrl.u32 %v844, 16
      %v848 = vrot.slane %v846, 5
      %v849 = vshll.u32 %v844, 16
      %v851 = vrot.slane %v849, 6
      %v852 = vor.u32 %v848, %v851
      %v853 = vrot.slane %v852, 4
      %vm856 = vcmask 1043458
      %vm857 = vsmask.f32 7946
      %vm858 = vmand %vm856, %vm857
      %vm859 = vcmask 1047558
      %vm860 = vsmask.f32 7962
      %vm861 = vmand %vm859, %vm860
      %vm862 = vmor %vm861, %vm858
      %v863 = vld [vmem:[#allocation2] sm:$0xcc]
      %v864 = vsel %vm862, %v852, %v863
      %865 = vst [vmem:[#allocation2] sm:$0xcc] %v864
      %866 = vst [vmem:[#allocation2 + $0x8] sm:$0x11] %v853
      %v867 = vld [vmem:[%s138] sm:$0xff]
      %v868 = vld [vmem:[%s138 + $0x8] sm:$0xff]
      %v869 = vld [vmem:[%s138 + $0x18] sm:$0xff]
      %v870 = vld [vmem:[%s138 + $0x20] sm:$0xff]
      %v871 = vld [vmem:[%s138 + $0x30] sm:$0xff]
      %v872 = vld [vmem:[%s138 + $0x38] sm:$0xff]
      %v873 = vld [vmem:[%s138 + $0x48] sm:$0xff]
      %v874 = vld [vmem:[%s138 + $0x50] sm:$0xff]
      %v875 = vld [vmem:[%s138 + $0x60] sm:$0xff]
      %v876 = vld [vmem:[%s138 + $0x68] sm:$0xff]
      %887 = vrot.lane.b32.xlu0 %v867, 126
      %v888 = vpop.permute.xlu0 %887
      %889 = vrot.lane.b32.xlu0 %v868, 126
      %v890 = vpop.permute.xlu0 %889
      %891 = vrot.lane.b32.xlu0 %v869, 126
      %v892 = vpop.permute.xlu0 %891
      %893 = vrot.lane.b32.xlu0 %v870, 126
      %v894 = vpop.permute.xlu0 %893
      %895 = vrot.lane.b32.xlu0 %v871, 126
      %v896 = vpop.permute.xlu0 %895
      %897 = vrot.lane.b32.xlu0 %v872, 126
      %v898 = vpop.permute.xlu0 %897
      %899 = vrot.lane.b32.xlu0 %v873, 126
      %v900 = vpop.permute.xlu0 %899
      %901 = vrot.lane.b32.xlu0 %v874, 126
      %v902 = vpop.permute.xlu0 %901
      %903 = vrot.lane.b32.xlu0 %v875, 126
      %v904 = vpop.permute.xlu0 %903
      %905 = vrot.lane.b32.xlu0 %v876, 126
      %v906 = vpop.permute.xlu0 %905
      %v917 = vcombine.low %v888, %v896
      %v918 = vcombine.high %v888, %v896
      %v920 = vunpack.c.l.s4 1983009808
      %v921 = vunpack.c.0.s8 %v920
      %v922 = vlaneseq
      %v923 = vshrl.u32 %v922, 7
      %v924 = vsub.s32 %v921, %v923
      %v925 = vrot.slane %v917, %v924
      %v927 = vunpack.c.l.s4 1983009808
      %v928 = vunpack.c.0.s8 %v927
      %v929 = vlaneseq
      %v930 = vshrl.u32 %v929, 7
      %v931 = vsub.s32 %v928, %v930
      %v932 = vrot.slane %v918, %v931
      %v933 = vcombine.low %v892, %v900
      %v934 = vcombine.high %v892, %v900
      %v936 = vunpack.c.l.s4 1983009808
      %v937 = vunpack.c.0.s8 %v936
      %v938 = vlaneseq
      %v939 = vshrl.u32 %v938, 7
      %v940 = vsub.s32 %v937, %v939
      %v941 = vrot.slane %v933, %v940
      %v943 = vunpack.c.l.s4 1983009808
      %v944 = vunpack.c.0.s8 %v943
      %v945 = vlaneseq
      %v946 = vshrl.u32 %v945, 7
      %v947 = vsub.s32 %v944, %v946
      %v948 = vrot.slane %v934, %v947
      %v949 = vcombine.high %v904, 0.0
      %v951 = vunpack.c.l.s4 1983009808
      %v952 = vunpack.c.0.s8 %v951
      %v953 = vlaneseq
      %v954 = vshrl.u32 %v953, 7
      %v955 = vsub.s32 %v952, %v954
      %v956 = vrot.slane %v904, %v955
      %v958 = vunpack.c.l.s4 1983009808
      %v959 = vunpack.c.0.s8 %v958
      %v960 = vlaneseq
      %v961 = vshrl.u32 %v960, 7
      %v962 = vsub.s32 %v959, %v961
      %v963 = vrot.slane %v949, %v962
      %v964 = vcombine.low %v925, %v941
      %v965 = vcombine.high %v925, %v941
      %v967 = vunpack.c.l.s4 1934713408
      %v968 = vunpack.c.0.s8 %v967
      %v969 = vlaneseq
      %v970 = vshrl.u32 %v969, 7
      %v971 = vsub.s32 %v968, %v970
      %v972 = vrot.slane %v964, %v971
      %v974 = vunpack.c.l.s4 1934713408
      %v975 = vunpack.c.0.s8 %v974
      %v976 = vlaneseq
      %v977 = vshrl.u32 %v976, 7
      %v978 = vsub.s32 %v975, %v977
      %v979 = vrot.slane %v965, %v978
      %v980 = vcombine.low %v932, %v948
      %v981 = vcombine.high %v932, %v948
      %v983 = vunpack.c.l.s4 1934713408
      %v984 = vunpack.c.0.s8 %v983
      %v985 = vlaneseq
      %v986 = vshrl.u32 %v985, 7
      %v987 = vsub.s32 %v984, %v986
      %v988 = vrot.slane %v980, %v987
      %v990 = vunpack.c.l.s4 1934713408
      %v991 = vunpack.c.0.s8 %v990
      %v992 = vlaneseq
      %v993 = vshrl.u32 %v992, 7
      %v994 = vsub.s32 %v991, %v993
      %v995 = vrot.slane %v981, %v994
      %v996 = vcombine.high %v956, 0.0
      %v998 = vunpack.c.l.s4 1934713408
      %v999 = vunpack.c.0.s8 %v998
      %v1000 = vlaneseq
      %v1001 = vshrl.u32 %v1000, 7
      %v1002 = vsub.s32 %v999, %v1001
      %v1003 = vrot.slane %v956, %v1002
      %v1005 = vunpack.c.l.s4 1934713408
      %v1006 = vunpack.c.0.s8 %v1005
      %v1007 = vlaneseq
      %v1008 = vshrl.u32 %v1007, 7
      %v1009 = vsub.s32 %v1006, %v1008
      %v1010 = vrot.slane %v996, %v1009
      %v1011 = vcombine.high %v963, 0.0
      %v1013 = vunpack.c.l.s4 1934713408
      %v1014 = vunpack.c.0.s8 %v1013
      %v1015 = vlaneseq
      %v1016 = vshrl.u32 %v1015, 7
      %v1017 = vsub.s32 %v1014, %v1016
      %v1018 = vrot.slane %v963, %v1017
      %v1020 = vunpack.c.l.s4 1934713408
      %v1021 = vunpack.c.0.s8 %v1020
      %v1022 = vlaneseq
      %v1023 = vshrl.u32 %v1022, 7
      %v1024 = vsub.s32 %v1021, %v1023
      %v1025 = vrot.slane %v1011, %v1024
      %v1026 = vcombine.low %v972, %v1003
      %v1027 = vcombine.high %v972, %v1003
      %v1028 = vcombine.low %v979, %v1010
      %v1029 = vcombine.high %v979, %v1010
      %v1030 = vcombine.low %v988, %v1018
      %v1031 = vcombine.high %v988, %v1018
      %v1032 = vcombine.low %v995, %v1025
      %v1033 = vcombine.high %v995, %v1025
      %v1034 = vcombine.low %v890, %v898
      %v1035 = vcombine.high %v890, %v898
      %v1037 = vunpack.c.l.s4 1983009808
      %v1038 = vunpack.c.0.s8 %v1037
      %v1039 = vlaneseq
      %v1040 = vshrl.u32 %v1039, 7
      %v1041 = vsub.s32 %v1038, %v1040
      %v1042 = vrot.slane %v1034, %v1041
      %v1044 = vunpack.c.l.s4 1983009808
      %v1045 = vunpack.c.0.s8 %v1044
      %v1046 = vlaneseq
      %v1047 = vshrl.u32 %v1046, 7
      %v1048 = vsub.s32 %v1045, %v1047
      %v1049 = vrot.slane %v1035, %v1048
      %v1050 = vcombine.low %v894, %v902
      %v1051 = vcombine.high %v894, %v902
      %v1053 = vunpack.c.l.s4 1983009808
      %v1054 = vunpack.c.0.s8 %v1053
      %v1055 = vlaneseq
      %v1056 = vshrl.u32 %v1055, 7
      %v1057 = vsub.s32 %v1054, %v1056
      %v1058 = vrot.slane %v1050, %v1057
      %v1060 = vunpack.c.l.s4 1983009808
      %v1061 = vunpack.c.0.s8 %v1060
      %v1062 = vlaneseq
      %v1063 = vshrl.u32 %v1062, 7
      %v1064 = vsub.s32 %v1061, %v1063
      %v1065 = vrot.slane %v1051, %v1064
      %v1066 = vcombine.high %v906, 0.0
      %v1068 = vunpack.c.l.s4 1983009808
      %v1069 = vunpack.c.0.s8 %v1068
      %v1070 = vlaneseq
      %v1071 = vshrl.u32 %v1070, 7
      %v1072 = vsub.s32 %v1069, %v1071
      %v1073 = vrot.slane %v906, %v1072
      %v1075 = vunpack.c.l.s4 1983009808
      %v1076 = vunpack.c.0.s8 %v1075
      %v1077 = vlaneseq
      %v1078 = vshrl.u32 %v1077, 7
      %v1079 = vsub.s32 %v1076, %v1078
      %v1080 = vrot.slane %v1066, %v1079
      %v1081 = vcombine.low %v1042, %v1058
      %v1082 = vcombine.high %v1042, %v1058
      %v1084 = vunpack.c.l.s4 1934713408
      %v1085 = vunpack.c.0.s8 %v1084
      %v1086 = vlaneseq
      %v1087 = vshrl.u32 %v1086, 7
      %v1088 = vsub.s32 %v1085, %v1087
      %v1089 = vrot.slane %v1081, %v1088
      %v1091 = vunpack.c.l.s4 1934713408
      %v1092 = vunpack.c.0.s8 %v1091
      %v1093 = vlaneseq
      %v1094 = vshrl.u32 %v1093, 7
      %v1095 = vsub.s32 %v1092, %v1094
      %v1096 = vrot.slane %v1082, %v1095
      %v1097 = vcombine.low %v1049, %v1065
      %v1098 = vcombine.high %v1049, %v1065
      %v1100 = vunpack.c.l.s4 1934713408
      %v1101 = vunpack.c.0.s8 %v1100
      %v1102 = vlaneseq
      %v1103 = vshrl.u32 %v1102, 7
      %v1104 = vsub.s32 %v1101, %v1103
      %v1105 = vrot.slane %v1097, %v1104
      %v1107 = vunpack.c.l.s4 1934713408
      %v1108 = vunpack.c.0.s8 %v1107
      %v1109 = vlaneseq
      %v1110 = vshrl.u32 %v1109, 7
      %v1111 = vsub.s32 %v1108, %v1110
      %v1112 = vrot.slane %v1098, %v1111
      %v1113 = vcombine.high %v1073, 0.0
      %v1115 = vunpack.c.l.s4 1934713408
      %v1116 = vunpack.c.0.s8 %v1115
      %v1117 = vlaneseq
      %v1118 = vshrl.u32 %v1117, 7
      %v1119 = vsub.s32 %v1116, %v1118
      %v1120 = vrot.slane %v1073, %v1119
      %v1122 = vunpack.c.l.s4 1934713408
      %v1123 = vunpack.c.0.s8 %v1122
      %v1124 = vlaneseq
      %v1125 = vshrl.u32 %v1124, 7
      %v1126 = vsub.s32 %v1123, %v1125
      %v1127 = vrot.slane %v1113, %v1126
      %v1128 = vcombine.high %v1080, 0.0
      %v1130 = vunpack.c.l.s4 1934713408
      %v1131 = vunpack.c.0.s8 %v1130
      %v1132 = vlaneseq
      %v1133 = vshrl.u32 %v1132, 7
      %v1134 = vsub.s32 %v1131, %v1133
      %v1135 = vrot.slane %v1080, %v1134
      %v1137 = vunpack.c.l.s4 1934713408
      %v1138 = vunpack.c.0.s8 %v1137
      %v1139 = vlaneseq
      %v1140 = vshrl.u32 %v1139, 7
      %v1141 = vsub.s32 %v1138, %v1140
      %v1142 = vrot.slane %v1128, %v1141
      %v1143 = vcombine.low %v1089, %v1120
      %v1144 = vcombine.high %v1089, %v1120
      %v1145 = vcombine.low %v1096, %v1127
      %v1146 = vcombine.high %v1096, %v1127
      %v1147 = vcombine.low %v1105, %v1135
      %v1148 = vcombine.high %v1105, %v1135
      %v1149 = vcombine.low %v1112, %v1142
      %v1150 = vcombine.high %v1112, %v1142
      %1152 = vrot.lane.b32.xlu0 %v1027, 16
      %v1153 = vpop.permute.xlu0 %1152
      %1156 = vrot.lane.b32.xlu0 %v1028, 32
      %v1157 = vpop.permute.xlu0 %1156
      %1160 = vrot.lane.b32.xlu0 %v1029, 48
      %v1161 = vpop.permute.xlu0 %1160
      %1164 = vrot.lane.b32.xlu0 %v1030, 64
      %v1165 = vpop.permute.xlu0 %1164
      %1168 = vrot.lane.b32.xlu0 %v1031, 80
      %v1169 = vpop.permute.xlu0 %1168
      %1172 = vrot.lane.b32.xlu0 %v1032, 96
      %v1173 = vpop.permute.xlu0 %1172
      %1176 = vrot.lane.b32.xlu0 %v1033, 112
      %v1177 = vpop.permute.xlu0 %1176
      %1180 = vrot.lane.b32.xlu0 %v1144, 16
      %v1181 = vpop.permute.xlu0 %1180
      %1184 = vrot.lane.b32.xlu0 %v1145, 32
      %v1185 = vpop.permute.xlu0 %1184
      %1188 = vrot.lane.b32.xlu0 %v1146, 48
      %v1189 = vpop.permute.xlu0 %1188
      %1192 = vrot.lane.b32.xlu0 %v1147, 64
      %v1193 = vpop.permute.xlu0 %1192
      %1196 = vrot.lane.b32.xlu0 %v1148, 80
      %v1197 = vpop.permute.xlu0 %1196
      %1200 = vrot.lane.b32.xlu0 %v1149, 96
      %v1201 = vpop.permute.xlu0 %1200
      %1204 = vrot.lane.b32.xlu0 %v1150, 112
      %v1205 = vpop.permute.xlu0 %1204
      %v1207 = vsel %vm445, %v1026, %v1153
      %v1208 = vsel %vm447, %v1207, %v1157
      %v1209 = vsel %vm449, %v1208, %v1161
      %v1210 = vsel %vm451, %v1209, %v1165
      %v1211 = vsel %vm453, %v1210, %v1169
      %v1212 = vsel %vm455, %v1211, %v1173
      %v1213 = vsel %vm457, %v1212, %v1177
      %v1214 = vsel %vm445, %v1143, %v1181
      %v1215 = vsel %vm447, %v1214, %v1185
      %v1216 = vsel %vm449, %v1215, %v1189
      %v1217 = vsel %vm451, %v1216, %v1193
      %v1218 = vsel %vm453, %v1217, %v1197
      %v1219 = vsel %vm455, %v1218, %v1201
      %v1220 = vsel %vm457, %v1219, %v1205
      %v1221 = vpack.c.bf16 %v1213, %v1213
      %v1222 = vpack.c.bf16 %v1220, %v1220
      %v1225 = vunpack.c.l.b16 %v1221
      %v1226 = vunpack.c.l.b16 %v1222
      %v1227 = vpack.c.b16 %v1226, %v1225
      %v1228 = vrot.slane %v1227, 7
      %vm1230 = vcmask 1043457
      %vm1231 = vsmask.f32 3328
      %vm1232 = vmand %vm1230, %vm1231
      %vm1233 = vcmask 1047557
      %vm1234 = vsmask.f32 7424
      %vm1235 = vmand %vm1233, %vm1234
      %vm1236 = vmor %vm1235, %vm1232
      %v1237 = vld [vmem:[#allocation2 + $0x8] sm:$0xee]
      %v1238 = vsel %vm1236, %v1228, %v1237
      %1239 = vst [vmem:[#allocation2 + $0x8] sm:$0xee] %v1238
      %v1240 = vld [vmem:[%s138 + $0x1] sm:$0xff]
      %v1241 = vld [vmem:[%s138 + $0x9] sm:$0xff]
      %v1242 = vld [vmem:[%s138 + $0x19] sm:$0xff]
      %v1243 = vld [vmem:[%s138 + $0x21] sm:$0xff]
      %v1244 = vld [vmem:[%s138 + $0x31] sm:$0xff]
      %v1245 = vld [vmem:[%s138 + $0x39] sm:$0xff]
      %v1246 = vld [vmem:[%s138 + $0x49] sm:$0xff]
      %v1247 = vld [vmem:[%s138 + $0x51] sm:$0xff]
      %v1248 = vld [vmem:[%s138 + $0x61] sm:$0xff]
      %v1249 = vld [vmem:[%s138 + $0x69] sm:$0xff]
      %v1250 = vcombine.low %v1240, %v1244
      %v1251 = vcombine.high %v1240, %v1244
      %v1253 = vunpack.c.l.s4 1983009808
      %v1254 = vunpack.c.0.s8 %v1253
      %v1255 = vlaneseq
      %v1256 = vshrl.u32 %v1255, 7
      %v1257 = vsub.s32 %v1254, %v1256
      %v1258 = vrot.slane %v1250, %v1257
      %v1260 = vunpack.c.l.s4 1983009808
      %v1261 = vunpack.c.0.s8 %v1260
      %v1262 = vlaneseq
      %v1263 = vshrl.u32 %v1262, 7
      %v1264 = vsub.s32 %v1261, %v1263
      %v1265 = vrot.slane %v1251, %v1264
      %v1266 = vcombine.low %v1242, %v1246
      %v1267 = vcombine.high %v1242, %v1246
      %v1269 = vunpack.c.l.s4 1983009808
      %v1270 = vunpack.c.0.s8 %v1269
      %v1271 = vlaneseq
      %v1272 = vshrl.u32 %v1271, 7
      %v1273 = vsub.s32 %v1270, %v1272
      %v1274 = vrot.slane %v1266, %v1273
      %v1276 = vunpack.c.l.s4 1983009808
      %v1277 = vunpack.c.0.s8 %v1276
      %v1278 = vlaneseq
      %v1279 = vshrl.u32 %v1278, 7
      %v1280 = vsub.s32 %v1277, %v1279
      %v1281 = vrot.slane %v1267, %v1280
      %v1282 = vcombine.high %v1248, 0.0
      %v1284 = vunpack.c.l.s4 1983009808
      %v1285 = vunpack.c.0.s8 %v1284
      %v1286 = vlaneseq
      %v1287 = vshrl.u32 %v1286, 7
      %v1288 = vsub.s32 %v1285, %v1287
      %v1289 = vrot.slane %v1248, %v1288
      %v1291 = vunpack.c.l.s4 1983009808
      %v1292 = vunpack.c.0.s8 %v1291
      %v1293 = vlaneseq
      %v1294 = vshrl.u32 %v1293, 7
      %v1295 = vsub.s32 %v1292, %v1294
      %v1296 = vrot.slane %v1282, %v1295
      %v1297 = vcombine.low %v1258, %v1274
      %v1298 = vcombine.high %v1258, %v1274
      %v1300 = vunpack.c.l.s4 1934713408
      %v1301 = vunpack.c.0.s8 %v1300
      %v1302 = vlaneseq
      %v1303 = vshrl.u32 %v1302, 7
      %v1304 = vsub.s32 %v1301, %v1303
      %v1305 = vrot.slane %v1297, %v1304
      %v1307 = vunpack.c.l.s4 1934713408
      %v1308 = vunpack.c.0.s8 %v1307
      %v1309 = vlaneseq
      %v1310 = vshrl.u32 %v1309, 7
      %v1311 = vsub.s32 %v1308, %v1310
      %v1312 = vrot.slane %v1298, %v1311
      %v1313 = vcombine.low %v1265, %v1281
      %v1314 = vcombine.high %v1265, %v1281
      %v1316 = vunpack.c.l.s4 1934713408
      %v1317 = vunpack.c.0.s8 %v1316
      %v1318 = vlaneseq
      %v1319 = vshrl.u32 %v1318, 7
      %v1320 = vsub.s32 %v1317, %v1319
      %v1321 = vrot.slane %v1313, %v1320
      %v1323 = vunpack.c.l.s4 1934713408
      %v1324 = vunpack.c.0.s8 %v1323
      %v1325 = vlaneseq
      %v1326 = vshrl.u32 %v1325, 7
      %v1327 = vsub.s32 %v1324, %v1326
      %v1328 = vrot.slane %v1314, %v1327
      %v1329 = vcombine.high %v1289, 0.0
      %v1331 = vunpack.c.l.s4 1934713408
      %v1332 = vunpack.c.0.s8 %v1331
      %v1333 = vlaneseq
      %v1334 = vshrl.u32 %v1333, 7
      %v1335 = vsub.s32 %v1332, %v1334
      %v1336 = vrot.slane %v1289, %v1335
      %v1338 = vunpack.c.l.s4 1934713408
      %v1339 = vunpack.c.0.s8 %v1338
      %v1340 = vlaneseq
      %v1341 = vshrl.u32 %v1340, 7
      %v1342 = vsub.s32 %v1339, %v1341
      %v1343 = vrot.slane %v1329, %v1342
      %v1344 = vcombine.high %v1296, 0.0
      %v1346 = vunpack.c.l.s4 1934713408
      %v1347 = vunpack.c.0.s8 %v1346
      %v1348 = vlaneseq
      %v1349 = vshrl.u32 %v1348, 7
      %v1350 = vsub.s32 %v1347, %v1349
      %v1351 = vrot.slane %v1296, %v1350
      %v1353 = vunpack.c.l.s4 1934713408
      %v1354 = vunpack.c.0.s8 %v1353
      %v1355 = vlaneseq
      %v1356 = vshrl.u32 %v1355, 7
      %v1357 = vsub.s32 %v1354, %v1356
      %v1358 = vrot.slane %v1344, %v1357
      %v1359 = vcombine.low %v1305, %v1336
      %v1360 = vcombine.high %v1305, %v1336
      %v1361 = vcombine.low %v1312, %v1343
      %v1362 = vcombine.high %v1312, %v1343
      %v1363 = vcombine.low %v1321, %v1351
      %v1364 = vcombine.high %v1321, %v1351
      %v1365 = vcombine.low %v1328, %v1358
      %v1366 = vcombine.high %v1328, %v1358
      %v1367 = vcombine.low %v1241, %v1245
      %v1368 = vcombine.high %v1241, %v1245
      %v1370 = vunpack.c.l.s4 1983009808
      %v1371 = vunpack.c.0.s8 %v1370
      %v1372 = vlaneseq
      %v1373 = vshrl.u32 %v1372, 7
      %v1374 = vsub.s32 %v1371, %v1373
      %v1375 = vrot.slane %v1367, %v1374
      %v1377 = vunpack.c.l.s4 1983009808
      %v1378 = vunpack.c.0.s8 %v1377
      %v1379 = vlaneseq
      %v1380 = vshrl.u32 %v1379, 7
      %v1381 = vsub.s32 %v1378, %v1380
      %v1382 = vrot.slane %v1368, %v1381
      %v1383 = vcombine.low %v1243, %v1247
      %v1384 = vcombine.high %v1243, %v1247
      %v1386 = vunpack.c.l.s4 1983009808
      %v1387 = vunpack.c.0.s8 %v1386
      %v1388 = vlaneseq
      %v1389 = vshrl.u32 %v1388, 7
      %v1390 = vsub.s32 %v1387, %v1389
      %v1391 = vrot.slane %v1383, %v1390
      %v1393 = vunpack.c.l.s4 1983009808
      %v1394 = vunpack.c.0.s8 %v1393
      %v1395 = vlaneseq
      %v1396 = vshrl.u32 %v1395, 7
      %v1397 = vsub.s32 %v1394, %v1396
      %v1398 = vrot.slane %v1384, %v1397
      %v1399 = vcombine.high %v1249, 0.0
      %v1401 = vunpack.c.l.s4 1983009808
      %v1402 = vunpack.c.0.s8 %v1401
      %v1403 = vlaneseq
      %v1404 = vshrl.u32 %v1403, 7
      %v1405 = vsub.s32 %v1402, %v1404
      %v1406 = vrot.slane %v1249, %v1405
      %v1408 = vunpack.c.l.s4 1983009808
      %v1409 = vunpack.c.0.s8 %v1408
      %v1410 = vlaneseq
      %v1411 = vshrl.u32 %v1410, 7
      %v1412 = vsub.s32 %v1409, %v1411
      %v1413 = vrot.slane %v1399, %v1412
      %v1414 = vcombine.low %v1375, %v1391
      %v1415 = vcombine.high %v1375, %v1391
      %v1417 = vunpack.c.l.s4 1934713408
      %v1418 = vunpack.c.0.s8 %v1417
      %v1419 = vlaneseq
      %v1420 = vshrl.u32 %v1419, 7
      %v1421 = vsub.s32 %v1418, %v1420
      %v1422 = vrot.slane %v1414, %v1421
      %v1424 = vunpack.c.l.s4 1934713408
      %v1425 = vunpack.c.0.s8 %v1424
      %v1426 = vlaneseq
      %v1427 = vshrl.u32 %v1426, 7
      %v1428 = vsub.s32 %v1425, %v1427
      %v1429 = vrot.slane %v1415, %v1428
      %v1430 = vcombine.low %v1382, %v1398
      %v1431 = vcombine.high %v1382, %v1398
      %v1433 = vunpack.c.l.s4 1934713408
      %v1434 = vunpack.c.0.s8 %v1433
      %v1435 = vlaneseq
      %v1436 = vshrl.u32 %v1435, 7
      %v1437 = vsub.s32 %v1434, %v1436
      %v1438 = vrot.slane %v1430, %v1437
      %v1440 = vunpack.c.l.s4 1934713408
      %v1441 = vunpack.c.0.s8 %v1440
      %v1442 = vlaneseq
      %v1443 = vshrl.u32 %v1442, 7
      %v1444 = vsub.s32 %v1441, %v1443
      %v1445 = vrot.slane %v1431, %v1444
      %v1446 = vcombine.high %v1406, 0.0
      %v1448 = vunpack.c.l.s4 1934713408
      %v1449 = vunpack.c.0.s8 %v1448
      %v1450 = vlaneseq
      %v1451 = vshrl.u32 %v1450, 7
      %v1452 = vsub.s32 %v1449, %v1451
      %v1453 = vrot.slane %v1406, %v1452
      %v1455 = vunpack.c.l.s4 1934713408
      %v1456 = vunpack.c.0.s8 %v1455
      %v1457 = vlaneseq
      %v1458 = vshrl.u32 %v1457, 7
      %v1459 = vsub.s32 %v1456, %v1458
      %v1460 = vrot.slane %v1446, %v1459
      %v1461 = vcombine.high %v1413, 0.0
      %v1463 = vunpack.c.l.s4 1934713408
      %v1464 = vunpack.c.0.s8 %v1463
      %v1465 = vlaneseq
      %v1466 = vshrl.u32 %v1465, 7
      %v1467 = vsub.s32 %v1464, %v1466
      %v1468 = vrot.slane %v1413, %v1467
      %v1470 = vunpack.c.l.s4 1934713408
      %v1471 = vunpack.c.0.s8 %v1470
      %v1472 = vlaneseq
      %v1473 = vshrl.u32 %v1472, 7
      %v1474 = vsub.s32 %v1471, %v1473
      %v1475 = vrot.slane %v1461, %v1474
      %v1476 = vcombine.low %v1422, %v1453
      %v1477 = vcombine.high %v1422, %v1453
      %v1478 = vcombine.low %v1429, %v1460
      %v1479 = vcombine.high %v1429, %v1460
      %v1480 = vcombine.low %v1438, %v1468
      %v1481 = vcombine.high %v1438, %v1468
      %v1482 = vcombine.low %v1445, %v1475
      %v1483 = vcombine.high %v1445, %v1475
      %1485 = vrot.lane.b32.xlu0 %v1360, 16
      %v1486 = vpop.permute.xlu0 %1485
      %1489 = vrot.lane.b32.xlu0 %v1361, 32
      %v1490 = vpop.permute.xlu0 %1489
      %1493 = vrot.lane.b32.xlu0 %v1362, 48
      %v1494 = vpop.permute.xlu0 %1493
      %1497 = vrot.lane.b32.xlu0 %v1363, 64
      %v1498 = vpop.permute.xlu0 %1497
      %1501 = vrot.lane.b32.xlu0 %v1364, 80
      %v1502 = vpop.permute.xlu0 %1501
      %1505 = vrot.lane.b32.xlu0 %v1365, 96
      %v1506 = vpop.permute.xlu0 %1505
      %1509 = vrot.lane.b32.xlu0 %v1366, 112
      %v1510 = vpop.permute.xlu0 %1509
      %1513 = vrot.lane.b32.xlu0 %v1477, 16
      %v1514 = vpop.permute.xlu0 %1513
      %1517 = vrot.lane.b32.xlu0 %v1478, 32
      %v1518 = vpop.permute.xlu0 %1517
      %1521 = vrot.lane.b32.xlu0 %v1479, 48
      %v1522 = vpop.permute.xlu0 %1521
      %1525 = vrot.lane.b32.xlu0 %v1480, 64
      %v1526 = vpop.permute.xlu0 %1525
      %1529 = vrot.lane.b32.xlu0 %v1481, 80
      %v1530 = vpop.permute.xlu0 %1529
      %1533 = vrot.lane.b32.xlu0 %v1482, 96
      %v1534 = vpop.permute.xlu0 %1533
      %1537 = vrot.lane.b32.xlu0 %v1483, 112
      %v1538 = vpop.permute.xlu0 %1537
      %v1540 = vsel %vm445, %v1359, %v1486
      %v1541 = vsel %vm447, %v1540, %v1490
      %v1542 = vsel %vm449, %v1541, %v1494
      %v1543 = vsel %vm451, %v1542, %v1498
      %v1544 = vsel %vm453, %v1543, %v1502
      %v1545 = vsel %vm455, %v1544, %v1506
      %v1546 = vsel %vm457, %v1545, %v1510
      %v1547 = vsel %vm445, %v1476, %v1514
      %v1548 = vsel %vm447, %v1547, %v1518
      %v1549 = vsel %vm449, %v1548, %v1522
      %v1550 = vsel %vm451, %v1549, %v1526
      %v1551 = vsel %vm453, %v1550, %v1530
      %v1552 = vsel %vm455, %v1551, %v1534
      %v1553 = vsel %vm457, %v1552, %v1538
      %v1554 = vpack.c.bf16 %v1546, %v1546
      %v1555 = vpack.c.bf16 %v1553, %v1553
      %v1558 = vunpack.c.l.b16 %v1554
      %v1559 = vunpack.c.l.b16 %v1555
      %v1560 = vpack.c.b16 %v1559, %v1558
      %v1562 = vshll.u32 %v1560, 16
      %v1564 = vrot.slane %v1562, 5
      %v1565 = vshrl.u32 %v1560, 16
      %v1567 = vrot.slane %v1565, 4
      %v1568 = vor.u32 %v1567, %v1564
      %v1569 = vrot.slane %v1568, 4
      %vm1572 = vcmask 1043459
      %vm1573 = vsmask.f32 7950
      %vm1574 = vmand %vm1572, %vm1573
      %vm1575 = vcmask 1047559
      %vm1576 = vsmask.f32 7966
      %vm1577 = vmand %vm1575, %vm1576
      %vm1578 = vmor %vm1577, %vm1574
      %v1579 = vld [vmem:[#allocation2 + $0x8] sm:$0x88]
      %v1580 = vsel %vm1578, %v1564, %v1579
      %1581 = vst [vmem:[#allocation2 + $0x8] sm:$0x88] %v1580
      %1582 = vst [vmem:[#allocation2 + $0x10] sm:$0x33] %v1569
      %v1583 = vld [vmem:[%s138 + $0x1] sm:$0xff]
      %v1584 = vld [vmem:[%s138 + $0x9] sm:$0xff]
      %v1585 = vld [vmem:[%s138 + $0x19] sm:$0xff]
      %v1586 = vld [vmem:[%s138 + $0x21] sm:$0xff]
      %v1587 = vld [vmem:[%s138 + $0x31] sm:$0xff]
      %v1588 = vld [vmem:[%s138 + $0x39] sm:$0xff]
      %v1589 = vld [vmem:[%s138 + $0x49] sm:$0xff]
      %v1590 = vld [vmem:[%s138 + $0x51] sm:$0xff]
      %v1591 = vld [vmem:[%s138 + $0x61] sm:$0xff]
      %v1592 = vld [vmem:[%s138 + $0x69] sm:$0xff]
      %1603 = vrot.lane.b32.xlu0 %v1583, 127
      %v1604 = vpop.permute.xlu0 %1603
      %1605 = vrot.lane.b32.xlu0 %v1584, 127
      %v1606 = vpop.permute.xlu0 %1605
      %1607 = vrot.lane.b32.xlu0 %v1585, 127
      %v1608 = vpop.permute.xlu0 %1607
      %1609 = vrot.lane.b32.xlu0 %v1586, 127
      %v1610 = vpop.permute.xlu0 %1609
      %1611 = vrot.lane.b32.xlu0 %v1587, 127
      %v1612 = vpop.permute.xlu0 %1611
      %1613 = vrot.lane.b32.xlu0 %v1588, 127
      %v1614 = vpop.permute.xlu0 %1613
      %1615 = vrot.lane.b32.xlu0 %v1589, 127
      %v1616 = vpop.permute.xlu0 %1615
      %1617 = vrot.lane.b32.xlu0 %v1590, 127
      %v1618 = vpop.permute.xlu0 %1617
      %1619 = vrot.lane.b32.xlu0 %v1591, 127
      %v1620 = vpop.permute.xlu0 %1619
      %1621 = vrot.lane.b32.xlu0 %v1592, 127
      %v1622 = vpop.permute.xlu0 %1621
      %v1633 = vcombine.low %v1604, %v1612
      %v1634 = vcombine.high %v1604, %v1612
      %v1636 = vunpack.c.l.s4 1983009808
      %v1637 = vunpack.c.0.s8 %v1636
      %v1638 = vlaneseq
      %v1639 = vshrl.u32 %v1638, 7
      %v1640 = vsub.s32 %v1637, %v1639
      %v1641 = vrot.slane %v1633, %v1640
      %v1643 = vunpack.c.l.s4 1983009808
      %v1644 = vunpack.c.0.s8 %v1643
      %v1645 = vlaneseq
      %v1646 = vshrl.u32 %v1645, 7
      %v1647 = vsub.s32 %v1644, %v1646
      %v1648 = vrot.slane %v1634, %v1647
      %v1649 = vcombine.low %v1608, %v1616
      %v1650 = vcombine.high %v1608, %v1616
      %v1652 = vunpack.c.l.s4 1983009808
      %v1653 = vunpack.c.0.s8 %v1652
      %v1654 = vlaneseq
      %v1655 = vshrl.u32 %v1654, 7
      %v1656 = vsub.s32 %v1653, %v1655
      %v1657 = vrot.slane %v1649, %v1656
      %v1659 = vunpack.c.l.s4 1983009808
      %v1660 = vunpack.c.0.s8 %v1659
      %v1661 = vlaneseq
      %v1662 = vshrl.u32 %v1661, 7
      %v1663 = vsub.s32 %v1660, %v1662
      %v1664 = vrot.slane %v1650, %v1663
      %v1665 = vcombine.high %v1620, 0.0
      %v1667 = vunpack.c.l.s4 1983009808
      %v1668 = vunpack.c.0.s8 %v1667
      %v1669 = vlaneseq
      %v1670 = vshrl.u32 %v1669, 7
      %v1671 = vsub.s32 %v1668, %v1670
      %v1672 = vrot.slane %v1620, %v1671
      %v1674 = vunpack.c.l.s4 1983009808
      %v1675 = vunpack.c.0.s8 %v1674
      %v1676 = vlaneseq
      %v1677 = vshrl.u32 %v1676, 7
      %v1678 = vsub.s32 %v1675, %v1677
      %v1679 = vrot.slane %v1665, %v1678
      %v1680 = vcombine.low %v1641, %v1657
      %v1681 = vcombine.high %v1641, %v1657
      %v1683 = vunpack.c.l.s4 1934713408
      %v1684 = vunpack.c.0.s8 %v1683
      %v1685 = vlaneseq
      %v1686 = vshrl.u32 %v1685, 7
      %v1687 = vsub.s32 %v1684, %v1686
      %v1688 = vrot.slane %v1680, %v1687
      %v1690 = vunpack.c.l.s4 1934713408
      %v1691 = vunpack.c.0.s8 %v1690
      %v1692 = vlaneseq
      %v1693 = vshrl.u32 %v1692, 7
      %v1694 = vsub.s32 %v1691, %v1693
      %v1695 = vrot.slane %v1681, %v1694
      %v1696 = vcombine.low %v1648, %v1664
      %v1697 = vcombine.high %v1648, %v1664
      %v1699 = vunpack.c.l.s4 1934713408
      %v1700 = vunpack.c.0.s8 %v1699
      %v1701 = vlaneseq
      %v1702 = vshrl.u32 %v1701, 7
      %v1703 = vsub.s32 %v1700, %v1702
      %v1704 = vrot.slane %v1696, %v1703
      %v1706 = vunpack.c.l.s4 1934713408
      %v1707 = vunpack.c.0.s8 %v1706
      %v1708 = vlaneseq
      %v1709 = vshrl.u32 %v1708, 7
      %v1710 = vsub.s32 %v1707, %v1709
      %v1711 = vrot.slane %v1697, %v1710
      %v1712 = vcombine.high %v1672, 0.0
      %v1714 = vunpack.c.l.s4 1934713408
      %v1715 = vunpack.c.0.s8 %v1714
      %v1716 = vlaneseq
      %v1717 = vshrl.u32 %v1716, 7
      %v1718 = vsub.s32 %v1715, %v1717
      %v1719 = vrot.slane %v1672, %v1718
      %v1721 = vunpack.c.l.s4 1934713408
      %v1722 = vunpack.c.0.s8 %v1721
      %v1723 = vlaneseq
      %v1724 = vshrl.u32 %v1723, 7
      %v1725 = vsub.s32 %v1722, %v1724
      %v1726 = vrot.slane %v1712, %v1725
      %v1727 = vcombine.high %v1679, 0.0
      %v1729 = vunpack.c.l.s4 1934713408
      %v1730 = vunpack.c.0.s8 %v1729
      %v1731 = vlaneseq
      %v1732 = vshrl.u32 %v1731, 7
      %v1733 = vsub.s32 %v1730, %v1732
      %v1734 = vrot.slane %v1679, %v1733
      %v1736 = vunpack.c.l.s4 1934713408
      %v1737 = vunpack.c.0.s8 %v1736
      %v1738 = vlaneseq
      %v1739 = vshrl.u32 %v1738, 7
      %v1740 = vsub.s32 %v1737, %v1739
      %v1741 = vrot.slane %v1727, %v1740
      %v1742 = vcombine.low %v1688, %v1719
      %v1743 = vcombine.high %v1688, %v1719
      %v1744 = vcombine.low %v1695, %v1726
      %v1745 = vcombine.high %v1695, %v1726
      %v1746 = vcombine.low %v1704, %v1734
      %v1747 = vcombine.high %v1704, %v1734
      %v1748 = vcombine.low %v1711, %v1741
      %v1749 = vcombine.high %v1711, %v1741
      %v1750 = vcombine.low %v1606, %v1614
      %v1751 = vcombine.high %v1606, %v1614
      %v1753 = vunpack.c.l.s4 1983009808
      %v1754 = vunpack.c.0.s8 %v1753
      %v1755 = vlaneseq
      %v1756 = vshrl.u32 %v1755, 7
      %v1757 = vsub.s32 %v1754, %v1756
      %v1758 = vrot.slane %v1750, %v1757
      %v1760 = vunpack.c.l.s4 1983009808
      %v1761 = vunpack.c.0.s8 %v1760
      %v1762 = vlaneseq
      %v1763 = vshrl.u32 %v1762, 7
      %v1764 = vsub.s32 %v1761, %v1763
      %v1765 = vrot.slane %v1751, %v1764
      %v1766 = vcombine.low %v1610, %v1618
      %v1767 = vcombine.high %v1610, %v1618
      %v1769 = vunpack.c.l.s4 1983009808
      %v1770 = vunpack.c.0.s8 %v1769
      %v1771 = vlaneseq
      %v1772 = vshrl.u32 %v1771, 7
      %v1773 = vsub.s32 %v1770, %v1772
      %v1774 = vrot.slane %v1766, %v1773
      %v1776 = vunpack.c.l.s4 1983009808
      %v1777 = vunpack.c.0.s8 %v1776
      %v1778 = vlaneseq
      %v1779 = vshrl.u32 %v1778, 7
      %v1780 = vsub.s32 %v1777, %v1779
      %v1781 = vrot.slane %v1767, %v1780
      %v1782 = vcombine.high %v1622, 0.0
      %v1784 = vunpack.c.l.s4 1983009808
      %v1785 = vunpack.c.0.s8 %v1784
      %v1786 = vlaneseq
      %v1787 = vshrl.u32 %v1786, 7
      %v1788 = vsub.s32 %v1785, %v1787
      %v1789 = vrot.slane %v1622, %v1788
      %v1791 = vunpack.c.l.s4 1983009808
      %v1792 = vunpack.c.0.s8 %v1791
      %v1793 = vlaneseq
      %v1794 = vshrl.u32 %v1793, 7
      %v1795 = vsub.s32 %v1792, %v1794
      %v1796 = vrot.slane %v1782, %v1795
      %v1797 = vcombine.low %v1758, %v1774
      %v1798 = vcombine.high %v1758, %v1774
      %v1800 = vunpack.c.l.s4 1934713408
      %v1801 = vunpack.c.0.s8 %v1800
      %v1802 = vlaneseq
      %v1803 = vshrl.u32 %v1802, 7
      %v1804 = vsub.s32 %v1801, %v1803
      %v1805 = vrot.slane %v1797, %v1804
      %v1807 = vunpack.c.l.s4 1934713408
      %v1808 = vunpack.c.0.s8 %v1807
      %v1809 = vlaneseq
      %v1810 = vshrl.u32 %v1809, 7
      %v1811 = vsub.s32 %v1808, %v1810
      %v1812 = vrot.slane %v1798, %v1811
      %v1813 = vcombine.low %v1765, %v1781
      %v1814 = vcombine.high %v1765, %v1781
      %v1816 = vunpack.c.l.s4 1934713408
      %v1817 = vunpack.c.0.s8 %v1816
      %v1818 = vlaneseq
      %v1819 = vshrl.u32 %v1818, 7
      %v1820 = vsub.s32 %v1817, %v1819
      %v1821 = vrot.slane %v1813, %v1820
      %v1823 = vunpack.c.l.s4 1934713408
      %v1824 = vunpack.c.0.s8 %v1823
      %v1825 = vlaneseq
      %v1826 = vshrl.u32 %v1825, 7
      %v1827 = vsub.s32 %v1824, %v1826
      %v1828 = vrot.slane %v1814, %v1827
      %v1829 = vcombine.high %v1789, 0.0
      %v1831 = vunpack.c.l.s4 1934713408
      %v1832 = vunpack.c.0.s8 %v1831
      %v1833 = vlaneseq
      %v1834 = vshrl.u32 %v1833, 7
      %v1835 = vsub.s32 %v1832, %v1834
      %v1836 = vrot.slane %v1789, %v1835
      %v1838 = vunpack.c.l.s4 1934713408
      %v1839 = vunpack.c.0.s8 %v1838
      %v1840 = vlaneseq
      %v1841 = vshrl.u32 %v1840, 7
      %v1842 = vsub.s32 %v1839, %v1841
      %v1843 = vrot.slane %v1829, %v1842
      %v1844 = vcombine.high %v1796, 0.0
      %v1846 = vunpack.c.l.s4 1934713408
      %v1847 = vunpack.c.0.s8 %v1846
      %v1848 = vlaneseq
      %v1849 = vshrl.u32 %v1848, 7
      %v1850 = vsub.s32 %v1847, %v1849
      %v1851 = vrot.slane %v1796, %v1850
      %v1853 = vunpack.c.l.s4 1934713408
      %v1854 = vunpack.c.0.s8 %v1853
      %v1855 = vlaneseq
      %v1856 = vshrl.u32 %v1855, 7
      %v1857 = vsub.s32 %v1854, %v1856
      %v1858 = vrot.slane %v1844, %v1857
      %v1859 = vcombine.low %v1805, %v1836
      %v1860 = vcombine.high %v1805, %v1836
      %v1861 = vcombine.low %v1812, %v1843
      %v1862 = vcombine.high %v1812, %v1843
      %v1863 = vcombine.low %v1821, %v1851
      %v1864 = vcombine.high %v1821, %v1851
      %v1865 = vcombine.low %v1828, %v1858
      %v1866 = vcombine.high %v1828, %v1858
      %1868 = vrot.lane.b32.xlu0 %v1743, 16
      %v1869 = vpop.permute.xlu0 %1868
      %1872 = vrot.lane.b32.xlu0 %v1744, 32
      %v1873 = vpop.permute.xlu0 %1872
      %1876 = vrot.lane.b32.xlu0 %v1745, 48
      %v1877 = vpop.permute.xlu0 %1876
      %1880 = vrot.lane.b32.xlu0 %v1746, 64
      %v1881 = vpop.permute.xlu0 %1880
      %1884 = vrot.lane.b32.xlu0 %v1747, 80
      %v1885 = vpop.permute.xlu0 %1884
      %1888 = vrot.lane.b32.xlu0 %v1748, 96
      %v1889 = vpop.permute.xlu0 %1888
      %1892 = vrot.lane.b32.xlu0 %v1749, 112
      %v1893 = vpop.permute.xlu0 %1892
      %1896 = vrot.lane.b32.xlu0 %v1860, 16
      %v1897 = vpop.permute.xlu0 %1896
      %1900 = vrot.lane.b32.xlu0 %v1861, 32
      %v1901 = vpop.permute.xlu0 %1900
      %1904 = vrot.lane.b32.xlu0 %v1862, 48
      %v1905 = vpop.permute.xlu0 %1904
      %1908 = vrot.lane.b32.xlu0 %v1863, 64
      %v1909 = vpop.permute.xlu0 %1908
      %1912 = vrot.lane.b32.xlu0 %v1864, 80
      %v1913 = vpop.permute.xlu0 %1912
      %1916 = vrot.lane.b32.xlu0 %v1865, 96
      %v1917 = vpop.permute.xlu0 %1916
      %1920 = vrot.lane.b32.xlu0 %v1866, 112
      %v1921 = vpop.permute.xlu0 %1920
      %v1923 = vsel %vm445, %v1742, %v1869
      %v1924 = vsel %vm447, %v1923, %v1873
      %v1925 = vsel %vm449, %v1924, %v1877
      %v1926 = vsel %vm451, %v1925, %v1881
      %v1927 = vsel %vm453, %v1926, %v1885
      %v1928 = vsel %vm455, %v1927, %v1889
      %v1929 = vsel %vm457, %v1928, %v1893
      %v1930 = vsel %vm445, %v1859, %v1897
      %v1931 = vsel %vm447, %v1930, %v1901
      %v1932 = vsel %vm449, %v1931, %v1905
      %v1933 = vsel %vm451, %v1932, %v1909
      %v1934 = vsel %vm453, %v1933, %v1913
      %v1935 = vsel %vm455, %v1934, %v1917
      %v1936 = vsel %vm457, %v1935, %v1921
      %v1937 = vpack.c.bf16 %v1929, %v1929
      %v1938 = vpack.c.bf16 %v1936, %v1936
      %v1941 = vunpack.c.l.b16 %v1937
      %v1942 = vunpack.c.l.b16 %v1938
      %v1943 = vpack.c.b16 %v1942, %v1941
      %v1944 = vrot.slane %v1943, 6
      %v1945 = vrot.slane %v1944, 4
      %1948 = vst [vmem:[#allocation2 + $0x10] sm:$0xcc] %v1944
      %vm1949 = vcmask 1040384
      %vm1950 = vsmask.f32 256
      %vm1951 = vmand %vm1949, %vm1950
      %vm1952 = vcmask 1044484
      %vm1953 = vsmask.f32 4352
      %vm1954 = vmand %vm1952, %vm1953
      %vm1955 = vmor %vm1954, %vm1951
      %v1956 = vld [vmem:[#allocation2 + $0x18] sm:$0x11]
      %v1957 = vsel %vm1955, %v1945, %v1956
      %1958 = vst [vmem:[#allocation2 + $0x18] sm:$0x11] %v1957
      %v1959 = vld [vmem:[%s138 + $0x1] sm:$0xff]
      %v1960 = vld [vmem:[%s138 + $0x9] sm:$0xff]
      %v1961 = vld [vmem:[%s138 + $0x19] sm:$0xff]
      %v1962 = vld [vmem:[%s138 + $0x21] sm:$0xff]
      %v1963 = vld [vmem:[%s138 + $0x31] sm:$0xff]
      %v1964 = vld [vmem:[%s138 + $0x39] sm:$0xff]
      %v1965 = vld [vmem:[%s138 + $0x49] sm:$0xff]
      %v1966 = vld [vmem:[%s138 + $0x51] sm:$0xff]
      %v1967 = vld [vmem:[%s138 + $0x61] sm:$0xff]
      %v1968 = vld [vmem:[%s138 + $0x69] sm:$0xff]
      %1979 = vrot.lane.b32.xlu0 %v1959, 126
      %v1980 = vpop.permute.xlu0 %1979
      %1981 = vrot.lane.b32.xlu0 %v1960, 126
      %v1982 = vpop.permute.xlu0 %1981
      %1983 = vrot.lane.b32.xlu0 %v1961, 126
      %v1984 = vpop.permute.xlu0 %1983
      %1985 = vrot.lane.b32.xlu0 %v1962, 126
      %v1986 = vpop.permute.xlu0 %1985
      %1987 = vrot.lane.b32.xlu0 %v1963, 126
      %v1988 = vpop.permute.xlu0 %1987
      %1989 = vrot.lane.b32.xlu0 %v1964, 126
      %v1990 = vpop.permute.xlu0 %1989
      %1991 = vrot.lane.b32.xlu0 %v1965, 126
      %v1992 = vpop.permute.xlu0 %1991
      %1993 = vrot.lane.b32.xlu0 %v1966, 126
      %v1994 = vpop.permute.xlu0 %1993
      %1995 = vrot.lane.b32.xlu0 %v1967, 126
      %v1996 = vpop.permute.xlu0 %1995
      %1997 = vrot.lane.b32.xlu0 %v1968, 126
      %v1998 = vpop.permute.xlu0 %1997
      %v2009 = vcombine.low %v1980, %v1988
      %v2010 = vcombine.high %v1980, %v1988
      %v2012 = vunpack.c.l.s4 1983009808
      %v2013 = vunpack.c.0.s8 %v2012
      %v2014 = vlaneseq
      %v2015 = vshrl.u32 %v2014, 7
      %v2016 = vsub.s32 %v2013, %v2015
      %v2017 = vrot.slane %v2009, %v2016
      %v2019 = vunpack.c.l.s4 1983009808
      %v2020 = vunpack.c.0.s8 %v2019
      %v2021 = vlaneseq
      %v2022 = vshrl.u32 %v2021, 7
      %v2023 = vsub.s32 %v2020, %v2022
      %v2024 = vrot.slane %v2010, %v2023
      %v2025 = vcombine.low %v1984, %v1992
      %v2026 = vcombine.high %v1984, %v1992
      %v2028 = vunpack.c.l.s4 1983009808
      %v2029 = vunpack.c.0.s8 %v2028
      %v2030 = vlaneseq
      %v2031 = vshrl.u32 %v2030, 7
      %v2032 = vsub.s32 %v2029, %v2031
      %v2033 = vrot.slane %v2025, %v2032
      %v2035 = vunpack.c.l.s4 1983009808
      %v2036 = vunpack.c.0.s8 %v2035
      %v2037 = vlaneseq
      %v2038 = vshrl.u32 %v2037, 7
      %v2039 = vsub.s32 %v2036, %v2038
      %v2040 = vrot.slane %v2026, %v2039
      %v2041 = vcombine.high %v1996, 0.0
      %v2043 = vunpack.c.l.s4 1983009808
      %v2044 = vunpack.c.0.s8 %v2043
      %v2045 = vlaneseq
      %v2046 = vshrl.u32 %v2045, 7
      %v2047 = vsub.s32 %v2044, %v2046
      %v2048 = vrot.slane %v1996, %v2047
      %v2050 = vunpack.c.l.s4 1983009808
      %v2051 = vunpack.c.0.s8 %v2050
      %v2052 = vlaneseq
      %v2053 = vshrl.u32 %v2052, 7
      %v2054 = vsub.s32 %v2051, %v2053
      %v2055 = vrot.slane %v2041, %v2054
      %v2056 = vcombine.low %v2017, %v2033
      %v2057 = vcombine.high %v2017, %v2033
      %v2059 = vunpack.c.l.s4 1934713408
      %v2060 = vunpack.c.0.s8 %v2059
      %v2061 = vlaneseq
      %v2062 = vshrl.u32 %v2061, 7
      %v2063 = vsub.s32 %v2060, %v2062
      %v2064 = vrot.slane %v2056, %v2063
      %v2066 = vunpack.c.l.s4 1934713408
      %v2067 = vunpack.c.0.s8 %v2066
      %v2068 = vlaneseq
      %v2069 = vshrl.u32 %v2068, 7
      %v2070 = vsub.s32 %v2067, %v2069
      %v2071 = vrot.slane %v2057, %v2070
      %v2072 = vcombine.low %v2024, %v2040
      %v2073 = vcombine.high %v2024, %v2040
      %v2075 = vunpack.c.l.s4 1934713408
      %v2076 = vunpack.c.0.s8 %v2075
      %v2077 = vlaneseq
      %v2078 = vshrl.u32 %v2077, 7
      %v2079 = vsub.s32 %v2076, %v2078
      %v2080 = vrot.slane %v2072, %v2079
      %v2082 = vunpack.c.l.s4 1934713408
      %v2083 = vunpack.c.0.s8 %v2082
      %v2084 = vlaneseq
      %v2085 = vshrl.u32 %v2084, 7
      %v2086 = vsub.s32 %v2083, %v2085
      %v2087 = vrot.slane %v2073, %v2086
      %v2088 = vcombine.high %v2048, 0.0
      %v2090 = vunpack.c.l.s4 1934713408
      %v2091 = vunpack.c.0.s8 %v2090
      %v2092 = vlaneseq
      %v2093 = vshrl.u32 %v2092, 7
      %v2094 = vsub.s32 %v2091, %v2093
      %v2095 = vrot.slane %v2048, %v2094
      %v2097 = vunpack.c.l.s4 1934713408
      %v2098 = vunpack.c.0.s8 %v2097
      %v2099 = vlaneseq
      %v2100 = vshrl.u32 %v2099, 7
      %v2101 = vsub.s32 %v2098, %v2100
      %v2102 = vrot.slane %v2088, %v2101
      %v2103 = vcombine.high %v2055, 0.0
      %v2105 = vunpack.c.l.s4 1934713408
      %v2106 = vunpack.c.0.s8 %v2105
      %v2107 = vlaneseq
      %v2108 = vshrl.u32 %v2107, 7
      %v2109 = vsub.s32 %v2106, %v2108
      %v2110 = vrot.slane %v2055, %v2109
      %v2112 = vunpack.c.l.s4 1934713408
      %v2113 = vunpack.c.0.s8 %v2112
      %v2114 = vlaneseq
      %v2115 = vshrl.u32 %v2114, 7
      %v2116 = vsub.s32 %v2113, %v2115
      %v2117 = vrot.slane %v2103, %v2116
      %v2118 = vcombine.low %v2064, %v2095
      %v2119 = vcombine.high %v2064, %v2095
      %v2120 = vcombine.low %v2071, %v2102
      %v2121 = vcombine.high %v2071, %v2102
      %v2122 = vcombine.low %v2080, %v2110
      %v2123 = vcombine.high %v2080, %v2110
      %v2124 = vcombine.low %v2087, %v2117
      %v2125 = vcombine.high %v2087, %v2117
      %v2126 = vcombine.low %v1982, %v1990
      %v2127 = vcombine.high %v1982, %v1990
      %v2129 = vunpack.c.l.s4 1983009808
      %v2130 = vunpack.c.0.s8 %v2129
      %v2131 = vlaneseq
      %v2132 = vshrl.u32 %v2131, 7
      %v2133 = vsub.s32 %v2130, %v2132
      %v2134 = vrot.slane %v2126, %v2133
      %v2136 = vunpack.c.l.s4 1983009808
      %v2137 = vunpack.c.0.s8 %v2136
      %v2138 = vlaneseq
      %v2139 = vshrl.u32 %v2138, 7
      %v2140 = vsub.s32 %v2137, %v2139
      %v2141 = vrot.slane %v2127, %v2140
      %v2142 = vcombine.low %v1986, %v1994
      %v2143 = vcombine.high %v1986, %v1994
      %v2145 = vunpack.c.l.s4 1983009808
      %v2146 = vunpack.c.0.s8 %v2145
      %v2147 = vlaneseq
      %v2148 = vshrl.u32 %v2147, 7
      %v2149 = vsub.s32 %v2146, %v2148
      %v2150 = vrot.slane %v2142, %v2149
      %v2152 = vunpack.c.l.s4 1983009808
      %v2153 = vunpack.c.0.s8 %v2152
      %v2154 = vlaneseq
      %v2155 = vshrl.u32 %v2154, 7
      %v2156 = vsub.s32 %v2153, %v2155
      %v2157 = vrot.slane %v2143, %v2156
      %v2158 = vcombine.high %v1998, 0.0
      %v2160 = vunpack.c.l.s4 1983009808
      %v2161 = vunpack.c.0.s8 %v2160
      %v2162 = vlaneseq
      %v2163 = vshrl.u32 %v2162, 7
      %v2164 = vsub.s32 %v2161, %v2163
      %v2165 = vrot.slane %v1998, %v2164
      %v2167 = vunpack.c.l.s4 1983009808
      %v2168 = vunpack.c.0.s8 %v2167
      %v2169 = vlaneseq
      %v2170 = vshrl.u32 %v2169, 7
      %v2171 = vsub.s32 %v2168, %v2170
      %v2172 = vrot.slane %v2158, %v2171
      %v2173 = vcombine.low %v2134, %v2150
      %v2174 = vcombine.high %v2134, %v2150
      %v2176 = vunpack.c.l.s4 1934713408
      %v2177 = vunpack.c.0.s8 %v2176
      %v2178 = vlaneseq
      %v2179 = vshrl.u32 %v2178, 7
      %v2180 = vsub.s32 %v2177, %v2179
      %v2181 = vrot.slane %v2173, %v2180
      %v2183 = vunpack.c.l.s4 1934713408
      %v2184 = vunpack.c.0.s8 %v2183
      %v2185 = vlaneseq
      %v2186 = vshrl.u32 %v2185, 7
      %v2187 = vsub.s32 %v2184, %v2186
      %v2188 = vrot.slane %v2174, %v2187
      %v2189 = vcombine.low %v2141, %v2157
      %v2190 = vcombine.high %v2141, %v2157
      %v2192 = vunpack.c.l.s4 1934713408
      %v2193 = vunpack.c.0.s8 %v2192
      %v2194 = vlaneseq
      %v2195 = vshrl.u32 %v2194, 7
      %v2196 = vsub.s32 %v2193, %v2195
      %v2197 = vrot.slane %v2189, %v2196
      %v2199 = vunpack.c.l.s4 1934713408
      %v2200 = vunpack.c.0.s8 %v2199
      %v2201 = vlaneseq
      %v2202 = vshrl.u32 %v2201, 7
      %v2203 = vsub.s32 %v2200, %v2202
      %v2204 = vrot.slane %v2190, %v2203
      %v2205 = vcombine.high %v2165, 0.0
      %v2207 = vunpack.c.l.s4 1934713408
      %v2208 = vunpack.c.0.s8 %v2207
      %v2209 = vlaneseq
      %v2210 = vshrl.u32 %v2209, 7
      %v2211 = vsub.s32 %v2208, %v2210
      %v2212 = vrot.slane %v2165, %v2211
      %v2214 = vunpack.c.l.s4 1934713408
      %v2215 = vunpack.c.0.s8 %v2214
      %v2216 = vlaneseq
      %v2217 = vshrl.u32 %v2216, 7
      %v2218 = vsub.s32 %v2215, %v2217
      %v2219 = vrot.slane %v2205, %v2218
      %v2220 = vcombine.high %v2172, 0.0
      %v2222 = vunpack.c.l.s4 1934713408
      %v2223 = vunpack.c.0.s8 %v2222
      %v2224 = vlaneseq
      %v2225 = vshrl.u32 %v2224, 7
      %v2226 = vsub.s32 %v2223, %v2225
      %v2227 = vrot.slane %v2172, %v2226
      %v2229 = vunpack.c.l.s4 1934713408
      %v2230 = vunpack.c.0.s8 %v2229
      %v2231 = vlaneseq
      %v2232 = vshrl.u32 %v2231, 7
      %v2233 = vsub.s32 %v2230, %v2232
      %v2234 = vrot.slane %v2220, %v2233
      %v2235 = vcombine.low %v2181, %v2212
      %v2236 = vcombine.high %v2181, %v2212
      %v2237 = vcombine.low %v2188, %v2219
      %v2238 = vcombine.high %v2188, %v2219
      %v2239 = vcombine.low %v2197, %v2227
      %v2240 = vcombine.high %v2197, %v2227
      %v2241 = vcombine.low %v2204, %v2234
      %v2242 = vcombine.high %v2204, %v2234
      %2244 = vrot.lane.b32.xlu0 %v2119, 16
      %v2245 = vpop.permute.xlu0 %2244
      %2248 = vrot.lane.b32.xlu0 %v2120, 32
      %v2249 = vpop.permute.xlu0 %2248
      %2252 = vrot.lane.b32.xlu0 %v2121, 48
      %v2253 = vpop.permute.xlu0 %2252
      %2256 = vrot.lane.b32.xlu0 %v2122, 64
      %v2257 = vpop.permute.xlu0 %2256
      %2260 = vrot.lane.b32.xlu0 %v2123, 80
      %v2261 = vpop.permute.xlu0 %2260
      %2264 = vrot.lane.b32.xlu0 %v2124, 96
      %v2265 = vpop.permute.xlu0 %2264
      %2268 = vrot.lane.b32.xlu0 %v2125, 112
      %v2269 = vpop.permute.xlu0 %2268
      %2272 = vrot.lane.b32.xlu0 %v2236, 16
      %v2273 = vpop.permute.xlu0 %2272
      %2276 = vrot.lane.b32.xlu0 %v2237, 32
      %v2277 = vpop.permute.xlu0 %2276
      %2280 = vrot.lane.b32.xlu0 %v2238, 48
      %v2281 = vpop.permute.xlu0 %2280
      %2284 = vrot.lane.b32.xlu0 %v2239, 64
      %v2285 = vpop.permute.xlu0 %2284
      %2288 = vrot.lane.b32.xlu0 %v2240, 80
      %v2289 = vpop.permute.xlu0 %2288
      %2292 = vrot.lane.b32.xlu0 %v2241, 96
      %v2293 = vpop.permute.xlu0 %2292
      %2296 = vrot.lane.b32.xlu0 %v2242, 112
      %v2297 = vpop.permute.xlu0 %2296
      %v2299 = vsel %vm445, %v2118, %v2245
      %v2300 = vsel %vm447, %v2299, %v2249
      %v2301 = vsel %vm449, %v2300, %v2253
      %v2302 = vsel %vm451, %v2301, %v2257
      %v2303 = vsel %vm453, %v2302, %v2261
      %v2304 = vsel %vm455, %v2303, %v2265
      %v2305 = vsel %vm457, %v2304, %v2269
      %v2306 = vsel %vm445, %v2235, %v2273
      %v2307 = vsel %vm447, %v2306, %v2277
      %v2308 = vsel %vm449, %v2307, %v2281
      %v2309 = vsel %vm451, %v2308, %v2285
      %v2310 = vsel %vm453, %v2309, %v2289
      %v2311 = vsel %vm455, %v2310, %v2293
      %v2312 = vsel %vm457, %v2311, %v2297
      %v2313 = vpack.c.bf16 %v2305, %v2305
      %v2314 = vpack.c.bf16 %v2312, %v2312
      %v2317 = vunpack.c.l.b16 %v2313
      %v2318 = vunpack.c.l.b16 %v2314
      %v2319 = vpack.c.b16 %v2318, %v2317
      %v2321 = vshrl.u32 %v2319, 16
      %v2323 = vrot.slane %v2321, 7
      %v2324 = vshll.u32 %v2319, 16
      %v2326 = vor.u32 %v2323, %v2324
      %vm2328 = vsmask.f32 7938
      %vm2329 = vmand %vm474, %vm2328
      %vm2330 = vsmask.f32 7954
      %vm2331 = vmand %vm477, %vm2330
      %vm2332 = vmor %vm2331, %vm2329
      %v2333 = vld [vmem:[#allocation2 + $0x18] sm:$0x77]
      %v2334 = vsel %vm2332, %v2326, %v2333
      %2335 = vst [vmem:[#allocation2 + $0x18] sm:$0x77] %v2334
      %v2336 = vld [vmem:[%s138 + $0x2] sm:$0xff]
      %v2337 = vld [vmem:[%s138 + $0xa] sm:$0xff]
      %v2338 = vld [vmem:[%s138 + $0x1a] sm:$0xff]
      %v2339 = vld [vmem:[%s138 + $0x22] sm:$0xff]
      %v2340 = vld [vmem:[%s138 + $0x32] sm:$0xff]
      %v2341 = vld [vmem:[%s138 + $0x3a] sm:$0xff]
      %v2342 = vld [vmem:[%s138 + $0x4a] sm:$0xff]
      %v2343 = vld [vmem:[%s138 + $0x52] sm:$0xff]
      %v2344 = vld [vmem:[%s138 + $0x62] sm:$0xff]
      %v2345 = vld [vmem:[%s138 + $0x6a] sm:$0xff]
      %v2346 = vcombine.low %v2336, %v2340
      %v2347 = vcombine.high %v2336, %v2340
      %v2349 = vunpack.c.l.s4 1983009808
      %v2350 = vunpack.c.0.s8 %v2349
      %v2351 = vlaneseq
      %v2352 = vshrl.u32 %v2351, 7
      %v2353 = vsub.s32 %v2350, %v2352
      %v2354 = vrot.slane %v2346, %v2353
      %v2356 = vunpack.c.l.s4 1983009808
      %v2357 = vunpack.c.0.s8 %v2356
      %v2358 = vlaneseq
      %v2359 = vshrl.u32 %v2358, 7
      %v2360 = vsub.s32 %v2357, %v2359
      %v2361 = vrot.slane %v2347, %v2360
      %v2362 = vcombine.low %v2338, %v2342
      %v2363 = vcombine.high %v2338, %v2342
      %v2365 = vunpack.c.l.s4 1983009808
      %v2366 = vunpack.c.0.s8 %v2365
      %v2367 = vlaneseq
      %v2368 = vshrl.u32 %v2367, 7
      %v2369 = vsub.s32 %v2366, %v2368
      %v2370 = vrot.slane %v2362, %v2369
      %v2372 = vunpack.c.l.s4 1983009808
      %v2373 = vunpack.c.0.s8 %v2372
      %v2374 = vlaneseq
      %v2375 = vshrl.u32 %v2374, 7
      %v2376 = vsub.s32 %v2373, %v2375
      %v2377 = vrot.slane %v2363, %v2376
      %v2378 = vcombine.high %v2344, 0.0
      %v2380 = vunpack.c.l.s4 1983009808
      %v2381 = vunpack.c.0.s8 %v2380
      %v2382 = vlaneseq
      %v2383 = vshrl.u32 %v2382, 7
      %v2384 = vsub.s32 %v2381, %v2383
      %v2385 = vrot.slane %v2344, %v2384
      %v2387 = vunpack.c.l.s4 1983009808
      %v2388 = vunpack.c.0.s8 %v2387
      %v2389 = vlaneseq
      %v2390 = vshrl.u32 %v2389, 7
      %v2391 = vsub.s32 %v2388, %v2390
      %v2392 = vrot.slane %v2378, %v2391
      %v2393 = vcombine.low %v2354, %v2370
      %v2394 = vcombine.high %v2354, %v2370
      %v2396 = vunpack.c.l.s4 1934713408
      %v2397 = vunpack.c.0.s8 %v2396
      %v2398 = vlaneseq
      %v2399 = vshrl.u32 %v2398, 7
      %v2400 = vsub.s32 %v2397, %v2399
      %v2401 = vrot.slane %v2393, %v2400
      %v2403 = vunpack.c.l.s4 1934713408
      %v2404 = vunpack.c.0.s8 %v2403
      %v2405 = vlaneseq
      %v2406 = vshrl.u32 %v2405, 7
      %v2407 = vsub.s32 %v2404, %v2406
      %v2408 = vrot.slane %v2394, %v2407
      %v2409 = vcombine.low %v2361, %v2377
      %v2410 = vcombine.high %v2361, %v2377
      %v2412 = vunpack.c.l.s4 1934713408
      %v2413 = vunpack.c.0.s8 %v2412
      %v2414 = vlaneseq
      %v2415 = vshrl.u32 %v2414, 7
      %v2416 = vsub.s32 %v2413, %v2415
      %v2417 = vrot.slane %v2409, %v2416
      %v2419 = vunpack.c.l.s4 1934713408
      %v2420 = vunpack.c.0.s8 %v2419
      %v2421 = vlaneseq
      %v2422 = vshrl.u32 %v2421, 7
      %v2423 = vsub.s32 %v2420, %v2422
      %v2424 = vrot.slane %v2410, %v2423
      %v2425 = vcombine.high %v2385, 0.0
      %v2427 = vunpack.c.l.s4 1934713408
      %v2428 = vunpack.c.0.s8 %v2427
      %v2429 = vlaneseq
      %v2430 = vshrl.u32 %v2429, 7
      %v2431 = vsub.s32 %v2428, %v2430
      %v2432 = vrot.slane %v2385, %v2431
      %v2434 = vunpack.c.l.s4 1934713408
      %v2435 = vunpack.c.0.s8 %v2434
      %v2436 = vlaneseq
      %v2437 = vshrl.u32 %v2436, 7
      %v2438 = vsub.s32 %v2435, %v2437
      %v2439 = vrot.slane %v2425, %v2438
      %v2440 = vcombine.high %v2392, 0.0
      %v2442 = vunpack.c.l.s4 1934713408
      %v2443 = vunpack.c.0.s8 %v2442
      %v2444 = vlaneseq
      %v2445 = vshrl.u32 %v2444, 7
      %v2446 = vsub.s32 %v2443, %v2445
      %v2447 = vrot.slane %v2392, %v2446
      %v2449 = vunpack.c.l.s4 1934713408
      %v2450 = vunpack.c.0.s8 %v2449
      %v2451 = vlaneseq
      %v2452 = vshrl.u32 %v2451, 7
      %v2453 = vsub.s32 %v2450, %v2452
      %v2454 = vrot.slane %v2440, %v2453
      %v2455 = vcombine.low %v2401, %v2432
      %v2456 = vcombine.high %v2401, %v2432
      %v2457 = vcombine.low %v2408, %v2439
      %v2458 = vcombine.high %v2408, %v2439
      %v2459 = vcombine.low %v2417, %v2447
      %v2460 = vcombine.high %v2417, %v2447
      %v2461 = vcombine.low %v2424, %v2454
      %v2462 = vcombine.high %v2424, %v2454
      %v2463 = vcombine.low %v2337, %v2341
      %v2464 = vcombine.high %v2337, %v2341
      %v2466 = vunpack.c.l.s4 1983009808
      %v2467 = vunpack.c.0.s8 %v2466
      %v2468 = vlaneseq
      %v2469 = vshrl.u32 %v2468, 7
      %v2470 = vsub.s32 %v2467, %v2469
      %v2471 = vrot.slane %v2463, %v2470
      %v2473 = vunpack.c.l.s4 1983009808
      %v2474 = vunpack.c.0.s8 %v2473
      %v2475 = vlaneseq
      %v2476 = vshrl.u32 %v2475, 7
      %v2477 = vsub.s32 %v2474, %v2476
      %v2478 = vrot.slane %v2464, %v2477
      %v2479 = vcombine.low %v2339, %v2343
      %v2480 = vcombine.high %v2339, %v2343
      %v2482 = vunpack.c.l.s4 1983009808
      %v2483 = vunpack.c.0.s8 %v2482
      %v2484 = vlaneseq
      %v2485 = vshrl.u32 %v2484, 7
      %v2486 = vsub.s32 %v2483, %v2485
      %v2487 = vrot.slane %v2479, %v2486
      %v2489 = vunpack.c.l.s4 1983009808
      %v2490 = vunpack.c.0.s8 %v2489
      %v2491 = vlaneseq
      %v2492 = vshrl.u32 %v2491, 7
      %v2493 = vsub.s32 %v2490, %v2492
      %v2494 = vrot.slane %v2480, %v2493
      %v2495 = vcombine.high %v2345, 0.0
      %v2497 = vunpack.c.l.s4 1983009808
      %v2498 = vunpack.c.0.s8 %v2497
      %v2499 = vlaneseq
      %v2500 = vshrl.u32 %v2499, 7
      %v2501 = vsub.s32 %v2498, %v2500
      %v2502 = vrot.slane %v2345, %v2501
      %v2504 = vunpack.c.l.s4 1983009808
      %v2505 = vunpack.c.0.s8 %v2504
      %v2506 = vlaneseq
      %v2507 = vshrl.u32 %v2506, 7
      %v2508 = vsub.s32 %v2505, %v2507
      %v2509 = vrot.slane %v2495, %v2508
      %v2510 = vcombine.low %v2471, %v2487
      %v2511 = vcombine.high %v2471, %v2487
      %v2513 = vunpack.c.l.s4 1934713408
      %v2514 = vunpack.c.0.s8 %v2513
      %v2515 = vlaneseq
      %v2516 = vshrl.u32 %v2515, 7
      %v2517 = vsub.s32 %v2514, %v2516
      %v2518 = vrot.slane %v2510, %v2517
      %v2520 = vunpack.c.l.s4 1934713408
      %v2521 = vunpack.c.0.s8 %v2520
      %v2522 = vlaneseq
      %v2523 = vshrl.u32 %v2522, 7
      %v2524 = vsub.s32 %v2521, %v2523
      %v2525 = vrot.slane %v2511, %v2524
      %v2526 = vcombine.low %v2478, %v2494
      %v2527 = vcombine.high %v2478, %v2494
      %v2529 = vunpack.c.l.s4 1934713408
      %v2530 = vunpack.c.0.s8 %v2529
      %v2531 = vlaneseq
      %v2532 = vshrl.u32 %v2531, 7
      %v2533 = vsub.s32 %v2530, %v2532
      %v2534 = vrot.slane %v2526, %v2533
      %v2536 = vunpack.c.l.s4 1934713408
      %v2537 = vunpack.c.0.s8 %v2536
      %v2538 = vlaneseq
      %v2539 = vshrl.u32 %v2538, 7
      %v2540 = vsub.s32 %v2537, %v2539
      %v2541 = vrot.slane %v2527, %v2540
      %v2542 = vcombine.high %v2502, 0.0
      %v2544 = vunpack.c.l.s4 1934713408
      %v2545 = vunpack.c.0.s8 %v2544
      %v2546 = vlaneseq
      %v2547 = vshrl.u32 %v2546, 7
      %v2548 = vsub.s32 %v2545, %v2547
      %v2549 = vrot.slane %v2502, %v2548
      %v2551 = vunpack.c.l.s4 1934713408
      %v2552 = vunpack.c.0.s8 %v2551
      %v2553 = vlaneseq
      %v2554 = vshrl.u32 %v2553, 7
      %v2555 = vsub.s32 %v2552, %v2554
      %v2556 = vrot.slane %v2542, %v2555
      %v2557 = vcombine.high %v2509, 0.0
      %v2559 = vunpack.c.l.s4 1934713408
      %v2560 = vunpack.c.0.s8 %v2559
      %v2561 = vlaneseq
      %v2562 = vshrl.u32 %v2561, 7
      %v2563 = vsub.s32 %v2560, %v2562
      %v2564 = vrot.slane %v2509, %v2563
      %v2566 = vunpack.c.l.s4 1934713408
      %v2567 = vunpack.c.0.s8 %v2566
      %v2568 = vlaneseq
      %v2569 = vshrl.u32 %v2568, 7
      %v2570 = vsub.s32 %v2567, %v2569
      %v2571 = vrot.slane %v2557, %v2570
      %v2572 = vcombine.low %v2518, %v2549
      %v2573 = vcombine.high %v2518, %v2549
      %v2574 = vcombine.low %v2525, %v2556
      %v2575 = vcombine.high %v2525, %v2556
      %v2576 = vcombine.low %v2534, %v2564
      %v2577 = vcombine.high %v2534, %v2564
      %v2578 = vcombine.low %v2541, %v2571
      %v2579 = vcombine.high %v2541, %v2571
      %2581 = vrot.lane.b32.xlu0 %v2456, 16
      %v2582 = vpop.permute.xlu0 %2581
      %2585 = vrot.lane.b32.xlu0 %v2457, 32
      %v2586 = vpop.permute.xlu0 %2585
      %2589 = vrot.lane.b32.xlu0 %v2458, 48
      %v2590 = vpop.permute.xlu0 %2589
      %2593 = vrot.lane.b32.xlu0 %v2459, 64
      %v2594 = vpop.permute.xlu0 %2593
      %2597 = vrot.lane.b32.xlu0 %v2460, 80
      %v2598 = vpop.permute.xlu0 %2597
      %2601 = vrot.lane.b32.xlu0 %v2461, 96
      %v2602 = vpop.permute.xlu0 %2601
      %2605 = vrot.lane.b32.xlu0 %v2462, 112
      %v2606 = vpop.permute.xlu0 %2605
      %2609 = vrot.lane.b32.xlu0 %v2573, 16
      %v2610 = vpop.permute.xlu0 %2609
      %2613 = vrot.lane.b32.xlu0 %v2574, 32
      %v2614 = vpop.permute.xlu0 %2613
      %2617 = vrot.lane.b32.xlu0 %v2575, 48
      %v2618 = vpop.permute.xlu0 %2617
      %2621 = vrot.lane.b32.xlu0 %v2576, 64
      %v2622 = vpop.permute.xlu0 %2621
      %2625 = vrot.lane.b32.xlu0 %v2577, 80
      %v2626 = vpop.permute.xlu0 %2625
      %2629 = vrot.lane.b32.xlu0 %v2578, 96
      %v2630 = vpop.permute.xlu0 %2629
      %2633 = vrot.lane.b32.xlu0 %v2579, 112
      %v2634 = vpop.permute.xlu0 %2633
      %v2636 = vsel %vm445, %v2455, %v2582
      %v2637 = vsel %vm447, %v2636, %v2586
      %v2638 = vsel %vm449, %v2637, %v2590
      %v2639 = vsel %vm451, %v2638, %v2594
      %v2640 = vsel %vm453, %v2639, %v2598
      %v2641 = vsel %vm455, %v2640, %v2602
      %v2642 = vsel %vm457, %v2641, %v2606
      %v2643 = vsel %vm445, %v2572, %v2610
      %v2644 = vsel %vm447, %v2643, %v2614
      %v2645 = vsel %vm449, %v2644, %v2618
      %v2646 = vsel %vm451, %v2645, %v2622
      %v2647 = vsel %vm453, %v2646, %v2626
      %v2648 = vsel %vm455, %v2647, %v2630
      %v2649 = vsel %vm457, %v2648, %v2634
      %v2650 = vpack.c.bf16 %v2642, %v2642
      %v2651 = vpack.c.bf16 %v2649, %v2649
      %v2654 = vunpack.c.l.b16 %v2650
      %v2655 = vunpack.c.l.b16 %v2651
      %v2656 = vpack.c.b16 %v2655, %v2654
      %v2657 = vrot.slane %v2656, 5
      %v2658 = vrot.slane %v2657, 4
      %2661 = vst [vmem:[#allocation2 + $0x18] sm:$0x88] %v2657
      %vm2662 = vcmask 1041408
      %vm2663 = vsmask.f32 1280
      %vm2664 = vmand %vm2662, %vm2663
      %vm2665 = vcmask 1045508
      %vm2666 = vsmask.f32 5376
      %vm2667 = vmand %vm2665, %vm2666
      %vm2668 = vmor %vm2667, %vm2664
      %v2669 = vld [vmem:[#allocation2 + $0x20] sm:$0x33]
      %v2670 = vsel %vm2668, %v2658, %v2669
      %2671 = vst [vmem:[#allocation2 + $0x20] sm:$0x33] %v2670
      %v2672 = vld [vmem:[%s138 + $0x2] sm:$0xff]
      %v2673 = vld [vmem:[%s138 + $0xa] sm:$0xff]
      %v2674 = vld [vmem:[%s138 + $0x1a] sm:$0xff]
      %v2675 = vld [vmem:[%s138 + $0x22] sm:$0xff]
      %v2676 = vld [vmem:[%s138 + $0x32] sm:$0xff]
      %v2677 = vld [vmem:[%s138 + $0x3a] sm:$0xff]
      %v2678 = vld [vmem:[%s138 + $0x4a] sm:$0xff]
      %v2679 = vld [vmem:[%s138 + $0x52] sm:$0xff]
      %v2680 = vld [vmem:[%s138 + $0x62] sm:$0xff]
      %v2681 = vld [vmem:[%s138 + $0x6a] sm:$0xff]
      %2692 = vrot.lane.b32.xlu0 %v2672, 127
      %v2693 = vpop.permute.xlu0 %2692
      %2694 = vrot.lane.b32.xlu0 %v2673, 127
      %v2695 = vpop.permute.xlu0 %2694
      %2696 = vrot.lane.b32.xlu0 %v2674, 127
      %v2697 = vpop.permute.xlu0 %2696
      %2698 = vrot.lane.b32.xlu0 %v2675, 127
      %v2699 = vpop.permute.xlu0 %2698
      %2700 = vrot.lane.b32.xlu0 %v2676, 127
      %v2701 = vpop.permute.xlu0 %2700
      %2702 = vrot.lane.b32.xlu0 %v2677, 127
      %v2703 = vpop.permute.xlu0 %2702
      %2704 = vrot.lane.b32.xlu0 %v2678, 127
      %v2705 = vpop.permute.xlu0 %2704
      %2706 = vrot.lane.b32.xlu0 %v2679, 127
      %v2707 = vpop.permute.xlu0 %2706
      %2708 = vrot.lane.b32.xlu0 %v2680, 127
      %v2709 = vpop.permute.xlu0 %2708
      %2710 = vrot.lane.b32.xlu0 %v2681, 127
      %v2711 = vpop.permute.xlu0 %2710
      %v2722 = vcombine.low %v2693, %v2701
      %v2723 = vcombine.high %v2693, %v2701
      %v2725 = vunpack.c.l.s4 1983009808
      %v2726 = vunpack.c.0.s8 %v2725
      %v2727 = vlaneseq
      %v2728 = vshrl.u32 %v2727, 7
      %v2729 = vsub.s32 %v2726, %v2728
      %v2730 = vrot.slane %v2722, %v2729
      %v2732 = vunpack.c.l.s4 1983009808
      %v2733 = vunpack.c.0.s8 %v2732
      %v2734 = vlaneseq
      %v2735 = vshrl.u32 %v2734, 7
      %v2736 = vsub.s32 %v2733, %v2735
      %v2737 = vrot.slane %v2723, %v2736
      %v2738 = vcombine.low %v2697, %v2705
      %v2739 = vcombine.high %v2697, %v2705
      %v2741 = vunpack.c.l.s4 1983009808
      %v2742 = vunpack.c.0.s8 %v2741
      %v2743 = vlaneseq
      %v2744 = vshrl.u32 %v2743, 7
      %v2745 = vsub.s32 %v2742, %v2744
      %v2746 = vrot.slane %v2738, %v2745
      %v2748 = vunpack.c.l.s4 1983009808
      %v2749 = vunpack.c.0.s8 %v2748
      %v2750 = vlaneseq
      %v2751 = vshrl.u32 %v2750, 7
      %v2752 = vsub.s32 %v2749, %v2751
      %v2753 = vrot.slane %v2739, %v2752
      %v2754 = vcombine.high %v2709, 0.0
      %v2756 = vunpack.c.l.s4 1983009808
      %v2757 = vunpack.c.0.s8 %v2756
      %v2758 = vlaneseq
      %v2759 = vshrl.u32 %v2758, 7
      %v2760 = vsub.s32 %v2757, %v2759
      %v2761 = vrot.slane %v2709, %v2760
      %v2763 = vunpack.c.l.s4 1983009808
      %v2764 = vunpack.c.0.s8 %v2763
      %v2765 = vlaneseq
      %v2766 = vshrl.u32 %v2765, 7
      %v2767 = vsub.s32 %v2764, %v2766
      %v2768 = vrot.slane %v2754, %v2767
      %v2769 = vcombine.low %v2730, %v2746
      %v2770 = vcombine.high %v2730, %v2746
      %v2772 = vunpack.c.l.s4 1934713408
      %v2773 = vunpack.c.0.s8 %v2772
      %v2774 = vlaneseq
      %v2775 = vshrl.u32 %v2774, 7
      %v2776 = vsub.s32 %v2773, %v2775
      %v2777 = vrot.slane %v2769, %v2776
      %v2779 = vunpack.c.l.s4 1934713408
      %v2780 = vunpack.c.0.s8 %v2779
      %v2781 = vlaneseq
      %v2782 = vshrl.u32 %v2781, 7
      %v2783 = vsub.s32 %v2780, %v2782
      %v2784 = vrot.slane %v2770, %v2783
      %v2785 = vcombine.low %v2737, %v2753
      %v2786 = vcombine.high %v2737, %v2753
      %v2788 = vunpack.c.l.s4 1934713408
      %v2789 = vunpack.c.0.s8 %v2788
      %v2790 = vlaneseq
      %v2791 = vshrl.u32 %v2790, 7
      %v2792 = vsub.s32 %v2789, %v2791
      %v2793 = vrot.slane %v2785, %v2792
      %v2795 = vunpack.c.l.s4 1934713408
      %v2796 = vunpack.c.0.s8 %v2795
      %v2797 = vlaneseq
      %v2798 = vshrl.u32 %v2797, 7
      %v2799 = vsub.s32 %v2796, %v2798
      %v2800 = vrot.slane %v2786, %v2799
      %v2801 = vcombine.high %v2761, 0.0
      %v2803 = vunpack.c.l.s4 1934713408
      %v2804 = vunpack.c.0.s8 %v2803
      %v2805 = vlaneseq
      %v2806 = vshrl.u32 %v2805, 7
      %v2807 = vsub.s32 %v2804, %v2806
      %v2808 = vrot.slane %v2761, %v2807
      %v2810 = vunpack.c.l.s4 1934713408
      %v2811 = vunpack.c.0.s8 %v2810
      %v2812 = vlaneseq
      %v2813 = vshrl.u32 %v2812, 7
      %v2814 = vsub.s32 %v2811, %v2813
      %v2815 = vrot.slane %v2801, %v2814
      %v2816 = vcombine.high %v2768, 0.0
      %v2818 = vunpack.c.l.s4 1934713408
      %v2819 = vunpack.c.0.s8 %v2818
      %v2820 = vlaneseq
      %v2821 = vshrl.u32 %v2820, 7
      %v2822 = vsub.s32 %v2819, %v2821
      %v2823 = vrot.slane %v2768, %v2822
      %v2825 = vunpack.c.l.s4 1934713408
      %v2826 = vunpack.c.0.s8 %v2825
      %v2827 = vlaneseq
      %v2828 = vshrl.u32 %v2827, 7
      %v2829 = vsub.s32 %v2826, %v2828
      %v2830 = vrot.slane %v2816, %v2829
      %v2831 = vcombine.low %v2777, %v2808
      %v2832 = vcombine.high %v2777, %v2808
      %v2833 = vcombine.low %v2784, %v2815
      %v2834 = vcombine.high %v2784, %v2815
      %v2835 = vcombine.low %v2793, %v2823
      %v2836 = vcombine.high %v2793, %v2823
      %v2837 = vcombine.low %v2800, %v2830
      %v2838 = vcombine.high %v2800, %v2830
      %v2839 = vcombine.low %v2695, %v2703
      %v2840 = vcombine.high %v2695, %v2703
      %v2842 = vunpack.c.l.s4 1983009808
      %v2843 = vunpack.c.0.s8 %v2842
      %v2844 = vlaneseq
      %v2845 = vshrl.u32 %v2844, 7
      %v2846 = vsub.s32 %v2843, %v2845
      %v2847 = vrot.slane %v2839, %v2846
      %v2849 = vunpack.c.l.s4 1983009808
      %v2850 = vunpack.c.0.s8 %v2849
      %v2851 = vlaneseq
      %v2852 = vshrl.u32 %v2851, 7
      %v2853 = vsub.s32 %v2850, %v2852
      %v2854 = vrot.slane %v2840, %v2853
      %v2855 = vcombine.low %v2699, %v2707
      %v2856 = vcombine.high %v2699, %v2707
      %v2858 = vunpack.c.l.s4 1983009808
      %v2859 = vunpack.c.0.s8 %v2858
      %v2860 = vlaneseq
      %v2861 = vshrl.u32 %v2860, 7
      %v2862 = vsub.s32 %v2859, %v2861
      %v2863 = vrot.slane %v2855, %v2862
      %v2865 = vunpack.c.l.s4 1983009808
      %v2866 = vunpack.c.0.s8 %v2865
      %v2867 = vlaneseq
      %v2868 = vshrl.u32 %v2867, 7
      %v2869 = vsub.s32 %v2866, %v2868
      %v2870 = vrot.slane %v2856, %v2869
      %v2871 = vcombine.high %v2711, 0.0
      %v2873 = vunpack.c.l.s4 1983009808
      %v2874 = vunpack.c.0.s8 %v2873
      %v2875 = vlaneseq
      %v2876 = vshrl.u32 %v2875, 7
      %v2877 = vsub.s32 %v2874, %v2876
      %v2878 = vrot.slane %v2711, %v2877
      %v2880 = vunpack.c.l.s4 1983009808
      %v2881 = vunpack.c.0.s8 %v2880
      %v2882 = vlaneseq
      %v2883 = vshrl.u32 %v2882, 7
      %v2884 = vsub.s32 %v2881, %v2883
      %v2885 = vrot.slane %v2871, %v2884
      %v2886 = vcombine.low %v2847, %v2863
      %v2887 = vcombine.high %v2847, %v2863
      %v2889 = vunpack.c.l.s4 1934713408
      %v2890 = vunpack.c.0.s8 %v2889
      %v2891 = vlaneseq
      %v2892 = vshrl.u32 %v2891, 7
      %v2893 = vsub.s32 %v2890, %v2892
      %v2894 = vrot.slane %v2886, %v2893
      %v2896 = vunpack.c.l.s4 1934713408
      %v2897 = vunpack.c.0.s8 %v2896
      %v2898 = vlaneseq
      %v2899 = vshrl.u32 %v2898, 7
      %v2900 = vsub.s32 %v2897, %v2899
      %v2901 = vrot.slane %v2887, %v2900
      %v2902 = vcombine.low %v2854, %v2870
      %v2903 = vcombine.high %v2854, %v2870
      %v2905 = vunpack.c.l.s4 1934713408
      %v2906 = vunpack.c.0.s8 %v2905
      %v2907 = vlaneseq
      %v2908 = vshrl.u32 %v2907, 7
      %v2909 = vsub.s32 %v2906, %v2908
      %v2910 = vrot.slane %v2902, %v2909
      %v2912 = vunpack.c.l.s4 1934713408
      %v2913 = vunpack.c.0.s8 %v2912
      %v2914 = vlaneseq
      %v2915 = vshrl.u32 %v2914, 7
      %v2916 = vsub.s32 %v2913, %v2915
      %v2917 = vrot.slane %v2903, %v2916
      %v2918 = vcombine.high %v2878, 0.0
      %v2920 = vunpack.c.l.s4 1934713408
      %v2921 = vunpack.c.0.s8 %v2920
      %v2922 = vlaneseq
      %v2923 = vshrl.u32 %v2922, 7
      %v2924 = vsub.s32 %v2921, %v2923
      %v2925 = vrot.slane %v2878, %v2924
      %v2927 = vunpack.c.l.s4 1934713408
      %v2928 = vunpack.c.0.s8 %v2927
      %v2929 = vlaneseq
      %v2930 = vshrl.u32 %v2929, 7
      %v2931 = vsub.s32 %v2928, %v2930
      %v2932 = vrot.slane %v2918, %v2931
      %v2933 = vcombine.high %v2885, 0.0
      %v2935 = vunpack.c.l.s4 1934713408
      %v2936 = vunpack.c.0.s8 %v2935
      %v2937 = vlaneseq
      %v2938 = vshrl.u32 %v2937, 7
      %v2939 = vsub.s32 %v2936, %v2938
      %v2940 = vrot.slane %v2885, %v2939
      %v2942 = vunpack.c.l.s4 1934713408
      %v2943 = vunpack.c.0.s8 %v2942
      %v2944 = vlaneseq
      %v2945 = vshrl.u32 %v2944, 7
      %v2946 = vsub.s32 %v2943, %v2945
      %v2947 = vrot.slane %v2933, %v2946
      %v2948 = vcombine.low %v2894, %v2925
      %v2949 = vcombine.high %v2894, %v2925
      %v2950 = vcombine.low %v2901, %v2932
      %v2951 = vcombine.high %v2901, %v2932
      %v2952 = vcombine.low %v2910, %v2940
      %v2953 = vcombine.high %v2910, %v2940
      %v2954 = vcombine.low %v2917, %v2947
      %v2955 = vcombine.high %v2917, %v2947
      %2957 = vrot.lane.b32.xlu0 %v2832, 16
      %v2958 = vpop.permute.xlu0 %2957
      %2961 = vrot.lane.b32.xlu0 %v2833, 32
      %v2962 = vpop.permute.xlu0 %2961
      %2965 = vrot.lane.b32.xlu0 %v2834, 48
      %v2966 = vpop.permute.xlu0 %2965
      %2969 = vrot.lane.b32.xlu0 %v2835, 64
      %v2970 = vpop.permute.xlu0 %2969
      %2973 = vrot.lane.b32.xlu0 %v2836, 80
      %v2974 = vpop.permute.xlu0 %2973
      %2977 = vrot.lane.b32.xlu0 %v2837, 96
      %v2978 = vpop.permute.xlu0 %2977
      %2981 = vrot.lane.b32.xlu0 %v2838, 112
      %v2982 = vpop.permute.xlu0 %2981
      %2985 = vrot.lane.b32.xlu0 %v2949, 16
      %v2986 = vpop.permute.xlu0 %2985
      %2989 = vrot.lane.b32.xlu0 %v2950, 32
      %v2990 = vpop.permute.xlu0 %2989
      %2993 = vrot.lane.b32.xlu0 %v2951, 48
      %v2994 = vpop.permute.xlu0 %2993
      %2997 = vrot.lane.b32.xlu0 %v2952, 64
      %v2998 = vpop.permute.xlu0 %2997
      %3001 = vrot.lane.b32.xlu0 %v2953, 80
      %v3002 = vpop.permute.xlu0 %3001
      %3005 = vrot.lane.b32.xlu0 %v2954, 96
      %v3006 = vpop.permute.xlu0 %3005
      %3009 = vrot.lane.b32.xlu0 %v2955, 112
      %v3010 = vpop.permute.xlu0 %3009
      %v3012 = vsel %vm445, %v2831, %v2958
      %v3013 = vsel %vm447, %v3012, %v2962
      %v3014 = vsel %vm449, %v3013, %v2966
      %v3015 = vsel %vm451, %v3014, %v2970
      %v3016 = vsel %vm453, %v3015, %v2974
      %v3017 = vsel %vm455, %v3016, %v2978
      %v3018 = vsel %vm457, %v3017, %v2982
      %v3019 = vsel %vm445, %v2948, %v2986
      %v3020 = vsel %vm447, %v3019, %v2990
      %v3021 = vsel %vm449, %v3020, %v2994
      %v3022 = vsel %vm451, %v3021, %v2998
      %v3023 = vsel %vm453, %v3022, %v3002
      %v3024 = vsel %vm455, %v3023, %v3006
      %v3025 = vsel %vm457, %v3024, %v3010
      %v3026 = vpack.c.bf16 %v3018, %v3018
      %v3027 = vpack.c.bf16 %v3025, %v3025
      %v3030 = vunpack.c.l.b16 %v3026
      %v3031 = vunpack.c.l.b16 %v3027
      %v3032 = vpack.c.b16 %v3031, %v3030
      %v3034 = vshrl.u32 %v3032, 16
      %v3036 = vrot.slane %v3034, 6
      %v3037 = vshll.u32 %v3032, 16
      %v3039 = vrot.slane %v3037, 7
      %v3040 = vor.u32 %v3036, %v3039
      %vm3042 = vsmask.f32 7942
      %vm3043 = vmand %vm1230, %vm3042
      %vm3044 = vsmask.f32 7958
      %vm3045 = vmand %vm1233, %vm3044
      %vm3046 = vmor %vm3045, %vm3043
      %v3047 = vld [vmem:[#allocation2 + $0x20] sm:$0xee]
      %v3048 = vsel %vm3046, %v3040, %v3047
      %3049 = vst [vmem:[#allocation2 + $0x20] sm:$0xee] %v3048
      %v3050 = vld [vmem:[%s138 + $0x2] sm:$0xff]
      %v3051 = vld [vmem:[%s138 + $0xa] sm:$0xff]
      %v3052 = vld [vmem:[%s138 + $0x1a] sm:$0xff]
      %v3053 = vld [vmem:[%s138 + $0x22] sm:$0xff]
      %v3054 = vld [vmem:[%s138 + $0x32] sm:$0xff]
      %v3055 = vld [vmem:[%s138 + $0x3a] sm:$0xff]
      %v3056 = vld [vmem:[%s138 + $0x4a] sm:$0xff]
      %v3057 = vld [vmem:[%s138 + $0x52] sm:$0xff]
      %v3058 = vld [vmem:[%s138 + $0x62] sm:$0xff]
      %v3059 = vld [vmem:[%s138 + $0x6a] sm:$0xff]
      %3070 = vrot.lane.b32.xlu0 %v3050, 126
      %v3071 = vpop.permute.xlu0 %3070
      %3072 = vrot.lane.b32.xlu0 %v3051, 126
      %v3073 = vpop.permute.xlu0 %3072
      %3074 = vrot.lane.b32.xlu0 %v3052, 126
      %v3075 = vpop.permute.xlu0 %3074
      %3076 = vrot.lane.b32.xlu0 %v3053, 126
      %v3077 = vpop.permute.xlu0 %3076
      %3078 = vrot.lane.b32.xlu0 %v3054, 126
      %v3079 = vpop.permute.xlu0 %3078
      %3080 = vrot.lane.b32.xlu0 %v3055, 126
      %v3081 = vpop.permute.xlu0 %3080
      %3082 = vrot.lane.b32.xlu0 %v3056, 126
      %v3083 = vpop.permute.xlu0 %3082
      %3084 = vrot.lane.b32.xlu0 %v3057, 126
      %v3085 = vpop.permute.xlu0 %3084
      %3086 = vrot.lane.b32.xlu0 %v3058, 126
      %v3087 = vpop.permute.xlu0 %3086
      %3088 = vrot.lane.b32.xlu0 %v3059, 126
      %v3089 = vpop.permute.xlu0 %3088
      %v3100 = vcombine.low %v3071, %v3079
      %v3101 = vcombine.high %v3071, %v3079
      %v3103 = vunpack.c.l.s4 1983009808
      %v3104 = vunpack.c.0.s8 %v3103
      %v3105 = vlaneseq
      %v3106 = vshrl.u32 %v3105, 7
      %v3107 = vsub.s32 %v3104, %v3106
      %v3108 = vrot.slane %v3100, %v3107
      %v3110 = vunpack.c.l.s4 1983009808
      %v3111 = vunpack.c.0.s8 %v3110
      %v3112 = vlaneseq
      %v3113 = vshrl.u32 %v3112, 7
      %v3114 = vsub.s32 %v3111, %v3113
      %v3115 = vrot.slane %v3101, %v3114
      %v3116 = vcombine.low %v3075, %v3083
      %v3117 = vcombine.high %v3075, %v3083
      %v3119 = vunpack.c.l.s4 1983009808
      %v3120 = vunpack.c.0.s8 %v3119
      %v3121 = vlaneseq
      %v3122 = vshrl.u32 %v3121, 7
      %v3123 = vsub.s32 %v3120, %v3122
      %v3124 = vrot.slane %v3116, %v3123
      %v3126 = vunpack.c.l.s4 1983009808
      %v3127 = vunpack.c.0.s8 %v3126
      %v3128 = vlaneseq
      %v3129 = vshrl.u32 %v3128, 7
      %v3130 = vsub.s32 %v3127, %v3129
      %v3131 = vrot.slane %v3117, %v3130
      %v3132 = vcombine.high %v3087, 0.0
      %v3134 = vunpack.c.l.s4 1983009808
      %v3135 = vunpack.c.0.s8 %v3134
      %v3136 = vlaneseq
      %v3137 = vshrl.u32 %v3136, 7
      %v3138 = vsub.s32 %v3135, %v3137
      %v3139 = vrot.slane %v3087, %v3138
      %v3141 = vunpack.c.l.s4 1983009808
      %v3142 = vunpack.c.0.s8 %v3141
      %v3143 = vlaneseq
      %v3144 = vshrl.u32 %v3143, 7
      %v3145 = vsub.s32 %v3142, %v3144
      %v3146 = vrot.slane %v3132, %v3145
      %v3147 = vcombine.low %v3108, %v3124
      %v3148 = vcombine.high %v3108, %v3124
      %v3150 = vunpack.c.l.s4 1934713408
      %v3151 = vunpack.c.0.s8 %v3150
      %v3152 = vlaneseq
      %v3153 = vshrl.u32 %v3152, 7
      %v3154 = vsub.s32 %v3151, %v3153
      %v3155 = vrot.slane %v3147, %v3154
      %v3157 = vunpack.c.l.s4 1934713408
      %v3158 = vunpack.c.0.s8 %v3157
      %v3159 = vlaneseq
      %v3160 = vshrl.u32 %v3159, 7
      %v3161 = vsub.s32 %v3158, %v3160
      %v3162 = vrot.slane %v3148, %v3161
      %v3163 = vcombine.low %v3115, %v3131
      %v3164 = vcombine.high %v3115, %v3131
      %v3166 = vunpack.c.l.s4 1934713408
      %v3167 = vunpack.c.0.s8 %v3166
      %v3168 = vlaneseq
      %v3169 = vshrl.u32 %v3168, 7
      %v3170 = vsub.s32 %v3167, %v3169
      %v3171 = vrot.slane %v3163, %v3170
      %v3173 = vunpack.c.l.s4 1934713408
      %v3174 = vunpack.c.0.s8 %v3173
      %v3175 = vlaneseq
      %v3176 = vshrl.u32 %v3175, 7
      %v3177 = vsub.s32 %v3174, %v3176
      %v3178 = vrot.slane %v3164, %v3177
      %v3179 = vcombine.high %v3139, 0.0
      %v3181 = vunpack.c.l.s4 1934713408
      %v3182 = vunpack.c.0.s8 %v3181
      %v3183 = vlaneseq
      %v3184 = vshrl.u32 %v3183, 7
      %v3185 = vsub.s32 %v3182, %v3184
      %v3186 = vrot.slane %v3139, %v3185
      %v3188 = vunpack.c.l.s4 1934713408
      %v3189 = vunpack.c.0.s8 %v3188
      %v3190 = vlaneseq
      %v3191 = vshrl.u32 %v3190, 7
      %v3192 = vsub.s32 %v3189, %v3191
      %v3193 = vrot.slane %v3179, %v3192
      %v3194 = vcombine.high %v3146, 0.0
      %v3196 = vunpack.c.l.s4 1934713408
      %v3197 = vunpack.c.0.s8 %v3196
      %v3198 = vlaneseq
      %v3199 = vshrl.u32 %v3198, 7
      %v3200 = vsub.s32 %v3197, %v3199
      %v3201 = vrot.slane %v3146, %v3200
      %v3203 = vunpack.c.l.s4 1934713408
      %v3204 = vunpack.c.0.s8 %v3203
      %v3205 = vlaneseq
      %v3206 = vshrl.u32 %v3205, 7
      %v3207 = vsub.s32 %v3204, %v3206
      %v3208 = vrot.slane %v3194, %v3207
      %v3209 = vcombine.low %v3155, %v3186
      %v3210 = vcombine.high %v3155, %v3186
      %v3211 = vcombine.low %v3162, %v3193
      %v3212 = vcombine.high %v3162, %v3193
      %v3213 = vcombine.low %v3171, %v3201
      %v3214 = vcombine.high %v3171, %v3201
      %v3215 = vcombine.low %v3178, %v3208
      %v3216 = vcombine.high %v3178, %v3208
      %v3217 = vcombine.low %v3073, %v3081
      %v3218 = vcombine.high %v3073, %v3081
      %v3220 = vunpack.c.l.s4 1983009808
      %v3221 = vunpack.c.0.s8 %v3220
      %v3222 = vlaneseq
      %v3223 = vshrl.u32 %v3222, 7
      %v3224 = vsub.s32 %v3221, %v3223
      %v3225 = vrot.slane %v3217, %v3224
      %v3227 = vunpack.c.l.s4 1983009808
      %v3228 = vunpack.c.0.s8 %v3227
      %v3229 = vlaneseq
      %v3230 = vshrl.u32 %v3229, 7
      %v3231 = vsub.s32 %v3228, %v3230
      %v3232 = vrot.slane %v3218, %v3231
      %v3233 = vcombine.low %v3077, %v3085
      %v3234 = vcombine.high %v3077, %v3085
      %v3236 = vunpack.c.l.s4 1983009808
      %v3237 = vunpack.c.0.s8 %v3236
      %v3238 = vlaneseq
      %v3239 = vshrl.u32 %v3238, 7
      %v3240 = vsub.s32 %v3237, %v3239
      %v3241 = vrot.slane %v3233, %v3240
      %v3243 = vunpack.c.l.s4 1983009808
      %v3244 = vunpack.c.0.s8 %v3243
      %v3245 = vlaneseq
      %v3246 = vshrl.u32 %v3245, 7
      %v3247 = vsub.s32 %v3244, %v3246
      %v3248 = vrot.slane %v3234, %v3247
      %v3249 = vcombine.high %v3089, 0.0
      %v3251 = vunpack.c.l.s4 1983009808
      %v3252 = vunpack.c.0.s8 %v3251
      %v3253 = vlaneseq
      %v3254 = vshrl.u32 %v3253, 7
      %v3255 = vsub.s32 %v3252, %v3254
      %v3256 = vrot.slane %v3089, %v3255
      %v3258 = vunpack.c.l.s4 1983009808
      %v3259 = vunpack.c.0.s8 %v3258
      %v3260 = vlaneseq
      %v3261 = vshrl.u32 %v3260, 7
      %v3262 = vsub.s32 %v3259, %v3261
      %v3263 = vrot.slane %v3249, %v3262
      %v3264 = vcombine.low %v3225, %v3241
      %v3265 = vcombine.high %v3225, %v3241
      %v3267 = vunpack.c.l.s4 1934713408
      %v3268 = vunpack.c.0.s8 %v3267
      %v3269 = vlaneseq
      %v3270 = vshrl.u32 %v3269, 7
      %v3271 = vsub.s32 %v3268, %v3270
      %v3272 = vrot.slane %v3264, %v3271
      %v3274 = vunpack.c.l.s4 1934713408
      %v3275 = vunpack.c.0.s8 %v3274
      %v3276 = vlaneseq
      %v3277 = vshrl.u32 %v3276, 7
      %v3278 = vsub.s32 %v3275, %v3277
      %v3279 = vrot.slane %v3265, %v3278
      %v3280 = vcombine.low %v3232, %v3248
      %v3281 = vcombine.high %v3232, %v3248
      %v3283 = vunpack.c.l.s4 1934713408
      %v3284 = vunpack.c.0.s8 %v3283
      %v3285 = vlaneseq
      %v3286 = vshrl.u32 %v3285, 7
      %v3287 = vsub.s32 %v3284, %v3286
      %v3288 = vrot.slane %v3280, %v3287
      %v3290 = vunpack.c.l.s4 1934713408
      %v3291 = vunpack.c.0.s8 %v3290
      %v3292 = vlaneseq
      %v3293 = vshrl.u32 %v3292, 7
      %v3294 = vsub.s32 %v3291, %v3293
      %v3295 = vrot.slane %v3281, %v3294
      %v3296 = vcombine.high %v3256, 0.0
      %v3298 = vunpack.c.l.s4 1934713408
      %v3299 = vunpack.c.0.s8 %v3298
      %v3300 = vlaneseq
      %v3301 = vshrl.u32 %v3300, 7
      %v3302 = vsub.s32 %v3299, %v3301
      %v3303 = vrot.slane %v3256, %v3302
      %v3305 = vunpack.c.l.s4 1934713408
      %v3306 = vunpack.c.0.s8 %v3305
      %v3307 = vlaneseq
      %v3308 = vshrl.u32 %v3307, 7
      %v3309 = vsub.s32 %v3306, %v3308
      %v3310 = vrot.slane %v3296, %v3309
      %v3311 = vcombine.high %v3263, 0.0
      %v3313 = vunpack.c.l.s4 1934713408
      %v3314 = vunpack.c.0.s8 %v3313
      %v3315 = vlaneseq
      %v3316 = vshrl.u32 %v3315, 7
      %v3317 = vsub.s32 %v3314, %v3316
      %v3318 = vrot.slane %v3263, %v3317
      %v3320 = vunpack.c.l.s4 1934713408
      %v3321 = vunpack.c.0.s8 %v3320
      %v3322 = vlaneseq
      %v3323 = vshrl.u32 %v3322, 7
      %v3324 = vsub.s32 %v3321, %v3323
      %v3325 = vrot.slane %v3311, %v3324
      %v3326 = vcombine.low %v3272, %v3303
      %v3327 = vcombine.high %v3272, %v3303
      %v3328 = vcombine.low %v3279, %v3310
      %v3329 = vcombine.high %v3279, %v3310
      %v3330 = vcombine.low %v3288, %v3318
      %v3331 = vcombine.high %v3288, %v3318
      %v3332 = vcombine.low %v3295, %v3325
      %v3333 = vcombine.high %v3295, %v3325
      %3335 = vrot.lane.b32.xlu0 %v3210, 16
      %v3336 = vpop.permute.xlu0 %3335
      %3339 = vrot.lane.b32.xlu0 %v3211, 32
      %v3340 = vpop.permute.xlu0 %3339
      %3343 = vrot.lane.b32.xlu0 %v3212, 48
      %v3344 = vpop.permute.xlu0 %3343
      %3347 = vrot.lane.b32.xlu0 %v3213, 64
      %v3348 = vpop.permute.xlu0 %3347
      %3351 = vrot.lane.b32.xlu0 %v3214, 80
      %v3352 = vpop.permute.xlu0 %3351
      %3355 = vrot.lane.b32.xlu0 %v3215, 96
      %v3356 = vpop.permute.xlu0 %3355
      %3359 = vrot.lane.b32.xlu0 %v3216, 112
      %v3360 = vpop.permute.xlu0 %3359
      %3363 = vrot.lane.b32.xlu0 %v3327, 16
      %v3364 = vpop.permute.xlu0 %3363
      %3367 = vrot.lane.b32.xlu0 %v3328, 32
      %v3368 = vpop.permute.xlu0 %3367
      %3371 = vrot.lane.b32.xlu0 %v3329, 48
      %v3372 = vpop.permute.xlu0 %3371
      %3375 = vrot.lane.b32.xlu0 %v3330, 64
      %v3376 = vpop.permute.xlu0 %3375
      %3379 = vrot.lane.b32.xlu0 %v3331, 80
      %v3380 = vpop.permute.xlu0 %3379
      %3383 = vrot.lane.b32.xlu0 %v3332, 96
      %v3384 = vpop.permute.xlu0 %3383
      %3387 = vrot.lane.b32.xlu0 %v3333, 112
      %v3388 = vpop.permute.xlu0 %3387
      %v3390 = vsel %vm445, %v3209, %v3336
      %v3391 = vsel %vm447, %v3390, %v3340
      %v3392 = vsel %vm449, %v3391, %v3344
      %v3393 = vsel %vm451, %v3392, %v3348
      %v3394 = vsel %vm453, %v3393, %v3352
      %v3395 = vsel %vm455, %v3394, %v3356
      %v3396 = vsel %vm457, %v3395, %v3360
      %v3397 = vsel %vm445, %v3326, %v3364
      %v3398 = vsel %vm447, %v3397, %v3368
      %v3399 = vsel %vm449, %v3398, %v3372
      %v3400 = vsel %vm451, %v3399, %v3376
      %v3401 = vsel %vm453, %v3400, %v3380
      %v3402 = vsel %vm455, %v3401, %v3384
      %v3403 = vsel %vm457, %v3402, %v3388
      %v3404 = vpack.c.bf16 %v3396, %v3396
      %v3405 = vpack.c.bf16 %v3403, %v3403
      %v3408 = vunpack.c.l.b16 %v3404
      %v3409 = vunpack.c.l.b16 %v3405
      %v3410 = vpack.c.b16 %v3409, %v3408
      %v3412 = vld [vmem:[#allocation2 + $0x28] sm:$0x77]
      %v3413 = vsel %vm480, %v3410, %v3412
      %3414 = vst [vmem:[#allocation2 + $0x28] sm:$0x77] %v3413
      %v3415 = vld [vmem:[%s1] sm:$0x7]
      %v3416 = vld [vmem:[#allocation2] sm:$0xff]
      %v3417 = vld [vmem:[#allocation2 + $0x8] sm:$0xff]
      %v3418 = vld [vmem:[#allocation2 + $0x10] sm:$0xff]
      %v3419 = vld [vmem:[#allocation2 + $0x18] sm:$0xff]
      %v3420 = vld [vmem:[#allocation2 + $0x20] sm:$0xff]
      %v3421 = vld [vmem:[#allocation2 + $0x28] sm:$0x77]
      %v3428 = vunpack.c.l.b16 %v3416
      %v3429 = vunpack.c.h.b16 %v3416
      %v3430 = vunpack.c.l.b16 %v3417
      %v3431 = vunpack.c.h.b16 %v3417
      %v3432 = vunpack.c.l.b16 %v3418
      %v3433 = vunpack.c.h.b16 %v3418
      %v3434 = vunpack.c.l.b16 %v3419
      %v3435 = vunpack.c.h.b16 %v3419
      %v3436 = vunpack.c.l.b16 %v3420
      %v3437 = vunpack.c.h.b16 %v3420
      %v3438 = vunpack.c.l.b16 %v3421
      %v3439 = vunpack.c.h.b16 %v3421
      %v3440 = vpack.c.b16 %v3430, %v3428
      %v3441 = vpack.c.b16 %v3431, %v3429
      %v3442 = vpack.c.b16 %v3434, %v3432
      %v3443 = vpack.c.b16 %v3435, %v3433
      %v3444 = vpack.c.b16 %v3438, %v3436
      %v3445 = vpack.c.b16 %v3439, %v3437
      %vm3450 = vcmask 367616
      %v3452 = vsel %vm3450, %v3415, 0
      %vm3454 = vcmask 1045504
      %vm3455 = vcmask 1046528
      %v3456 = vsel %vm3454, 4294967295, 65535
      %v3457 = vsel %vm3455, %v3456, 0
      %v3459 = vand.u32 %v3444, %v3457
      %v3462 = vand.u32 %v3445, %v3457
      %3464 = vmatprep.subr.bf16.mxu0 %v3441
      %3465 = vmatpush1.bf16.msra.mxu0 %v3440
      %3466 = vmatprep.subr.bf16.mxu0 %v3443
      %3467 = vmatpush1.bf16.msra.mxu0 %v3442
      %3468 = vmatprep.subr.bf16.mxu0 %v3462
      %3469 = vmatpush1.bf16.msra.mxu0 %v3459
      %3470 = vmatprep.subr.bf16.mxu0 0
      %3471 = vmatpush1.bf16.msra.mxu0 0
      %3472 = vmatprep.subr.bf16.mxu0 0
      %3473 = vmatpush1.bf16.msra.mxu0 0
      %3474 = vmatprep.subr.bf16.mxu0 0
      %3475 = vmatpush1.bf16.msra.mxu0 0
      %3476 = vmatprep.subr.bf16.mxu0 0
      %3477 = vmatpush1.bf16.msra.mxu0 0
      %3478 = vmatprep.subr.bf16.mxu0 0
      %3479 = vmatpush1.bf16.msra.mxu0 0
      %3480 = vmatprep.subr.bf16.mxu0 0
      %3481 = vmatpush1.bf16.msra.mxu0 0
      %3482 = vmatprep.subr.bf16.mxu0 0
      %3483 = vmatpush1.bf16.msra.mxu0 0
      %3484 = vmatprep.subr.bf16.mxu0 0
      %3485 = vmatpush1.bf16.msra.mxu0 0
      %3486 = vmatprep.subr.bf16.mxu0 0
      %3487 = vmatpush1.bf16.msra.mxu0 0
      %3488 = vmatprep.subr.bf16.mxu0 0
      %3489 = vmatpush1.bf16.msra.mxu0 0
      %3490 = vmatprep.subr.bf16.mxu0 0
      %3491 = vmatpush1.bf16.msra.mxu0 0
      %3492 = vmatprep.subr.bf16.mxu0 0
      %3493 = vmatpush1.bf16.msra.mxu0 0
      %3494 = vmatprep.subr.bf16.mxu0 0
      %3495 = vmatpush1.bf16.msra.mxu0 0
      %3496 = vmatprep.mubr.bf16.mxu0 0
      %3497 = vmatmul.mubr.bf16.gmra.mrb[0].mxu0 %v3452
      %v3498 = vpop.f32.mrb[0].mxu0
      %v3499 = vadd.f32 0.0, %v3498
      %v3500 = vpop.f32.mrb[0].mxu0
      %v3501 = vadd.f32 0.0, %v3500
      %v3502 = vpop.f32.mrb[0].mxu0
      %v3503 = vpop.f32.mrb[0].mxu0
      %3504 = vdwg.mxu0
      %3505 = vst [vmem:[%s143] sm:$0x3f] %v3499
      %3506 = vst [vmem:[%s143 + $0x8] sm:$0x3f] %v3501
      %p3507 = scmp.lt.s32.totalorder %s13, 1
      %s3508 = scalar_select %p3507, %s13, 1
      %s3509 = smul.addr %s3508, 2
      %s3510 = smul.addr %s3509, 8
      %s3511 = scalar_lea.vmem %s2, %s3510
      // Predicated region
      $region29: #{eigen_basis_conv_forward.1} parent=27 // pred_check
        %p3512 = pneg %p78
      $region30: #{eigen_basis_conv_forward.1} parent=27 // pred_check_branch
        %3514 = sbr.rel (%p3512) target = $region32
      $region31: #{eigen_basis_conv_forward.1} parent=27 // pred_region
        _
      $region32: #{eigen_basis_conv_forward.1} parent=27 // pred_fallthru
        _
    $region28: #{eigen_basis_conv_forward.1} parent=5 // pred_fallthru
      _
    %p3515 = scmp.le.s32.totalorder 2, %s8
    // Predicated region
    $region33: #{eigen_basis_conv_forward.1} parent=5 // pred_check
      %p3516 = pneg %p3515
    $region34: #{eigen_basis_conv_forward.1} parent=5 // pred_check_branch
      %3518 = sbr.rel (%p3516) target = $region36
    $region35: #{eigen_basis_conv_forward.1} parent=5 // pred_region
      %s3519 = ssub.s32 %s8, 2
      // Predicated region
      $region37: #{eigen_basis_conv_forward.1} parent=35 // pred_check
        %p3520 = pneg %p84
      $region38: #{eigen_basis_conv_forward.1} parent=35 // pred_check_branch
        %3522 = sbr.rel (%p3520) target = $region40
      $region39: #{eigen_basis_conv_forward.1} parent=35 // pred_region
        %p3523 = scmp.lt.s32.totalorder %s14, 1
        %s3524 = scalar_select %p3523, %s14, 1
        %s3525 = smul.addr %s3524, 2
        %s3526 = smul.addr %s3525, 8
        %s3527 = scalar_lea.vmem %s2, %s3526
      $region40: #{eigen_basis_conv_forward.1} parent=35 // pred_fallthru
        _
    $region36: #{eigen_basis_conv_forward.1} parent=5 // pred_fallthru
      _
  $region6: #{eigen_basis_conv_forward.1} parent=0 // loop_footer
    %s12 = sadd.s32 1, %s8
  $region7: #{eigen_basis_conv_forward.1} parent=0 // loop_footer_branch
    %7 = sbr.rel target = $region3
  $region8: #{eigen_basis_conv_forward.1} parent=0 // loop_exit
    _

</llo_original>
